<compile_context>
chip_gen: v7x
topology: tpu7x:2x2x1
jax: 0.10.0
libtpu: 0.0.40
codegen_flags: <defaults>
</compile_context>

<pallas_src>
import functools
import math

import jax
import jax.numpy as jnp
from jax.experimental import pallas as pl
from jax.experimental.pallas import tpu as pltpu

BETA = 1.0  # next(repeat(1))


def svi_kernel(x_ref, eps_ref,
               wc_ref, bc_ref,
               w1x_ref, w1yb_ref,
               wmulv_ref, bmulv_ref,
               wd1z_ref, wd1yb_ref, wd2_ref, bd2_ref,
               out_ref, acc_bce_ref, acc_u_ref,
               *, B, C, Z, cast_dtype):
    f32 = jnp.float32
    i = pl.program_id(0)

    @pl.when(i == 0)
    def _init():
        acc_bce_ref[...] = jnp.zeros_like(acc_bce_ref)
        acc_u_ref[...] = jnp.zeros_like(acc_u_ref)

    x = x_ref[...]                         # (TB, D) float32 (BCE target)
    D = x.shape[1]
    xm = x.astype(cast_dtype)

    # --- shared encoder input projection: computed once per row tile, reused for all C ---
    xW = jnp.dot(xm, w1x_ref[...].astype(cast_dtype),
                 preferred_element_type=f32)                       # (TB, H)

    # --- classifier q(y|x): stable softmax logits + entropy, (TB, C) lane-resident ---
    cl = jnp.dot(xm, wc_ref[...].astype(cast_dtype),
                 preferred_element_type=f32) + bc_ref[...]         # (TB, C)
    cl = cl - jnp.max(cl, axis=-1, keepdims=True)
    e = jnp.exp(cl)
    logits = e / jnp.sum(e, axis=-1, keepdims=True)
    ent = -jnp.sum(logits * jnp.log(logits + 1e-8),
                   axis=-1, keepdims=True)                         # (TB, 1)

    wmulv = wmulv_ref[...].astype(cast_dtype)                      # (H, 2Z) fused mu|logvar
    wd1z = wd1z_ref[...].astype(cast_dtype)
    wd2 = wd2_ref[...].astype(cast_dtype)
    bmulv = bmulv_ref[...]
    bd2 = bd2_ref[...]

    bce_sum = jnp.zeros((1, 1), f32)
    wkl = jnp.zeros((ent.shape[0], 1), f32)                        # sum_c logits[:,c]*kl[:,c]

    # --- enumerate classes: static, unrolled; one-hot matmuls -> row broadcasts ---
    for c in range(C):
        # encoder q(z | x, y=c); w1yb already includes b1
        h = jnp.maximum(xW + w1yb_ref[c:c + 1, :], 0.0)                  # (TB, H)
        mulv = jnp.dot(h.astype(cast_dtype), wmulv,
                       preferred_element_type=f32) + bmulv               # (TB, 2Z)
        mu = mulv[:, :Z]
        log_var = mulv[:, Z:]
        eps_c = eps_ref[:, c, :]                                         # (TB, Z)
        z = mu + jnp.exp(0.5 * log_var) * eps_c

        # Monte-Carlo KL(q(z|x,y) || N(0,I)) per row (shared constants cancel)
        kl_c = jnp.sum(0.5 * (z * z - log_var - eps_c * eps_c),
                       axis=-1, keepdims=True)                           # (TB, 1)

        # decoder p(x | z, y=c) -> logits t (no sigmoid; BCE done in logit space)
        h2 = jnp.maximum(jnp.dot(z.astype(cast_dtype), wd1z,
                                 preferred_element_type=f32)
                         + wd1yb_ref[c:c + 1, :], 0.0)                   # (TB, H)
        t = jnp.dot(h2.astype(cast_dtype), wd2,
                    preferred_element_type=f32) + bd2                    # (TB, D)

        # bce = softplus(t) - x*t = max(t,0) - x*t + log1p(exp(-|t|))
        bce = jnp.maximum(t, 0.0) - x * t + jnp.log1p(jnp.exp(-jnp.abs(t)))
        bce_sum = bce_sum + jnp.sum(jnp.sum(bce, axis=-1, keepdims=True),
                                    axis=0, keepdims=True)
        wkl = wkl + logits[:, c:c + 1] * kl_c

    acc_bce_ref[...] += bce_sum
    acc_u_ref[...] += jnp.sum(ent - BETA * wkl, axis=0, keepdims=True)   # (1, 1)

    @pl.when(i == pl.num_programs(0) - 1)
    def _finalize():
        n_total = B * C
        likelihood = -acc_bce_ref[...] * (1.0 / (n_total * D))           # (1,1) scalar
        const = jnp.float32(math.log(1.0 + 1e-8) + math.log(1.0 / C + 1e-8))
        out_ref[...] = const + likelihood + acc_u_ref[...] * (1.0 / B)


def svi_forward(x, params, eps, *, matmul_dtype=jnp.float32, row_tile=256):
    """Unlabelled SVI forward pass (y=None), returning a scalar.

    eps is the reparameterization noise, shape (B*C, Z), batch-major (row b*C + c).
    Set matmul_dtype=jnp.bfloat16 on v6e/v7x for full-rate MXU (f32 accumulate kept).
    """
    B, D = x.shape
    C = params["wc"].shape[1]
    Z = params["wmu"].shape[1]
    H = params["w1x"].shape[1]

    TB = B if B <= row_tile else row_tile
    assert B % TB == 0, "batch must be divisible by the row tile"
    if B // TB > 1:
        assert TB % 8 == 0, "row tile must be a multiple of 8 sublanes when tiling"
    nt = B // TB

    eps3 = eps.reshape(B, C, Z)                                       # per-row, per-class noise
    wmulv = jnp.concatenate([params["wmu"], params["wlv"]], axis=1)   # (H, 2Z)
    bmulv = jnp.concatenate([params["bmu"], params["blv"]], axis=1)   # (1, 2Z)
    w1yb = params["w1y"] + params["b1"]                               # fold encoder bias
    wd1yb = params["wd1y"] + params["bd1"]                            # fold decoder bias

    kern = functools.partial(svi_kernel, B=B, C=C, Z=Z, cast_dtype=matmul_dtype)
    full = lambda i: (0, 0)  # resident (non-tiled) operands

    grid_spec = pltpu.PrefetchScalarGridSpec(
        num_scalar_prefetch=0,
        grid=(nt,),
        in_specs=[
            pl.BlockSpec((TB, D), lambda i: (i, 0)),        # x (row-tiled)
            pl.BlockSpec((TB, C, Z), lambda i: (i, 0, 0)),  # eps (row-tiled)
            pl.BlockSpec((D, C), full),                     # wc
            pl.BlockSpec((1, C), full),                     # bc
            pl.BlockSpec((D, H), full),                     # w1x
            pl.BlockSpec((C, H), full),                     # w1y + b1
            pl.BlockSpec((H, 2 * Z), full),                 # wmu|wlv fused
            pl.BlockSpec((1, 2 * Z), full),                 # bmu|blv fused
            pl.BlockSpec((Z, H), full),                     # wd1z
            pl.BlockSpec((C, H), full),                     # wd1y + bd1
            pl.BlockSpec((H, D), full),                     # wd2
            pl.BlockSpec((1, D), full),                     # bd2
        ],
        out_specs=pl.BlockSpec((1, 1), lambda i: (0, 0)),
        scratch_shapes=[pltpu.VMEM((1, 1), jnp.float32),    # global BCE sum
                        pltpu.VMEM((1, 1), jnp.float32)],   # sum_b (H_b - beta*sum_c p*kl)
    )

    out = pl.pallas_call(
        kern,
        out_shape=jax.ShapeDtypeStruct((1, 1), jnp.float32),
        grid_spec=grid_spec,
        compiler_params=pltpu.CompilerParams(
            dimension_semantics=("arbitrary",),             # accumulator across row tiles
            vmem_limit_bytes=64 * 1024 * 1024),
    )(x, eps3,
      params["wc"], params["bc"],
      params["w1x"], w1yb,
      wmulv, bmulv,
      params["wd1z"], wd1yb,
      params["wd2"], params["bd2"])
    return out[0, 0]


def svi_reference(x, p, eps_bm):
    """Pure-JAX reference mirroring the PyTorch code path literally (class-major)."""
    B, D = x.shape
    C = p["wc"].shape[1]
    Z = eps_bm.shape[1]
    N = B * C
    xs = jnp.tile(x, (C, 1))                                     # x.repeat(y_dim, 1)
    ys = jnp.repeat(jnp.eye(C, dtype=x.dtype), B, axis=0)        # enumerate_discrete
    eps = eps_bm.reshape(B, C, Z).transpose(1, 0, 2).reshape(N, Z)
    h = jax.nn.relu(xs @ p["w1x"] + ys @ p["w1y"] + p["b1"])
    mu = h @ p["wmu"] + p["bmu"]
    log_var = h @ p["wlv"] + p["blv"]
    z = mu + jnp.exp(0.5 * log_var) * eps
    kl = jnp.sum(-0.5 * (log_var + eps ** 2) + 0.5 * (z ** 2), axis=-1)
    h2 = jax.nn.relu(z @ p["wd1z"] + ys @ p["wd1y"] + p["bd1"])
    recon = jax.nn.sigmoid(h2 @ p["wd2"] + p["bd2"])
    log_r = jnp.maximum(jnp.log(recon), -100.0)                  # PyTorch BCE clamp
    log_1mr = jnp.maximum(jnp.log(1.0 - recon), -100.0)
    likelihood = -jnp.mean(-(xs * log_r + (1.0 - xs) * log_1mr))
    prior = jnp.sum(ys * jnp.log(1.0 / C + 1e-8), axis=-1)
    elbo = likelihood + prior - BETA * kl
    e3 = elbo.reshape(1, 1, -1)
    m = jnp.max(e3, axis=1, keepdims=True)
    L = jnp.log(jnp.mean(jnp.exp(e3 - m), axis=1, keepdims=True) + 1e-8) + m
    L = jnp.mean(L, axis=0).reshape(-1)
    logits = jax.nn.softmax(x @ p["wc"] + p["bc"], axis=-1)
    Lmat = L.reshape(C, B).T                                     # L.view_as(logits.t()).t()
    H = -jnp.sum(logits * jnp.log(logits + 1e-8), axis=-1)
    Lw = jnp.sum(logits * Lmat, axis=-1)
    return jnp.mean(Lw + H)


def init_params(key, D, C, Z, H):
    ks = jax.random.split(key, 8)
    s = 0.1
    f32 = jnp.float32
    return {
        "wc":  s * jax.random.normal(ks[0], (D, C), f32),  "bc":  jnp.zeros((1, C), f32),
        "w1x": s * jax.random.normal(ks[1], (D, H), f32),
        "w1y": s * jax.random.normal(ks[2], (C, H), f32),  "b1":  jnp.zeros((1, H), f32),
        "wmu": s * jax.random.normal(ks[3], (H, Z), f32),  "bmu": jnp.zeros((1, Z), f32),
        "wlv": s * jax.random.normal(ks[4], (H, Z), f32),  "blv": jnp.zeros((1, Z), f32),
        "wd1z": s * jax.random.normal(ks[5], (Z, H), f32),
        "wd1y": s * jax.random.normal(ks[6], (C, H), f32), "bd1": jnp.zeros((1, H), f32),
        "wd2": s * jax.random.normal(ks[7], (H, D), f32),  "bd2": jnp.zeros((1, D), f32),
    }


if __name__ == "__main__":
    B, D, C, Z, H = 2, 32, 4, 16, 32     # batch, x_dim, y_dim, z_dim, hidden
    key = jax.random.PRNGKey(0)
    kx, ke, kp = jax.random.split(key, 3)
    x = jax.random.uniform(kx, (B, D), jnp.float32)          # BCE targets must be in [0,1]
    eps = jax.random.normal(ke, (B * C, Z), jnp.float32)     # reparam noise, row b*C + c
    params = init_params(kp, D, C, Z, H)

    out = jax.block_until_ready(svi_forward(x, params, eps))
    ref = svi_reference(x, params, eps)

    assert bool(jnp.isfinite(out))
    assert abs(float(out) - float(ref)) < 1e-3 + 1e-3 * abs(float(ref)), (out, ref)
    print("KERNEL_OK")
</pallas_src>

<mosaic_0001>
module attributes {stable_mosaic.version = 11 : i64} {
  func.func @svi_kernel(%arg0: i32, %arg1: memref<2x32xf32, #tpu.memory_space<vmem>>, %arg2: memref<2x4x16xf32, #tpu.memory_space<vmem>>, %arg3: memref<32x4xf32, #tpu.memory_space<vmem>>, %arg4: memref<1x4xf32, #tpu.memory_space<vmem>>, %arg5: memref<32x32xf32, #tpu.memory_space<vmem>>, %arg6: memref<4x32xf32, #tpu.memory_space<vmem>>, %arg7: memref<32x32xf32, #tpu.memory_space<vmem>>, %arg8: memref<1x32xf32, #tpu.memory_space<vmem>>, %arg9: memref<16x32xf32, #tpu.memory_space<vmem>>, %arg10: memref<4x32xf32, #tpu.memory_space<vmem>>, %arg11: memref<32x32xf32, #tpu.memory_space<vmem>>, %arg12: memref<1x32xf32, #tpu.memory_space<vmem>>, %arg13: memref<1x1xf32, #tpu.memory_space<vmem>>, %arg14: memref<1x1xf32, #tpu.memory_space<vmem>>, %arg15: memref<1x1xf32, #tpu.memory_space<vmem>>) attributes {dimension_semantics = [#tpu.dimension_semantics<arbitrary>], iteration_bounds = array<i64: 1>, scalar_prefetch = 0 : i64, scratch_operands = 2 : i64, tpu.core_type = #tpu.core_type<tc>, window_params = [{transform_indices = @transform_0, window_bounds = array<i64: 2, 32>}, {transform_indices = @transform_1, window_bounds = array<i64: 2, 4, 16>}, {pipeline_mode = #tpu.pipeline_mode<synchronous>, transform_indices = @transform_2, window_bounds = array<i64: 32, 4>}, {pipeline_mode = #tpu.pipeline_mode<synchronous>, transform_indices = @transform_3, window_bounds = array<i64: 1, 4>}, {pipeline_mode = #tpu.pipeline_mode<synchronous>, transform_indices = @transform_4, window_bounds = array<i64: 32, 32>}, {pipeline_mode = #tpu.pipeline_mode<synchronous>, transform_indices = @transform_5, window_bounds = array<i64: 4, 32>}, {pipeline_mode = #tpu.pipeline_mode<synchronous>, transform_indices = @transform_6, window_bounds = array<i64: 32, 32>}, {pipeline_mode = #tpu.pipeline_mode<synchronous>, transform_indices = @transform_7, window_bounds = array<i64: 1, 32>}, {pipeline_mode = #tpu.pipeline_mode<synchronous>, transform_indices = @transform_8, window_bounds = array<i64: 16, 32>}, {pipeline_mode = #tpu.pipeline_mode<synchronous>, transform_indices = @transform_9, window_bounds = array<i64: 4, 32>}, {pipeline_mode = #tpu.pipeline_mode<synchronous>, transform_indices = @transform_10, window_bounds = array<i64: 32, 32>}, {pipeline_mode = #tpu.pipeline_mode<synchronous>, transform_indices = @transform_11, window_bounds = array<i64: 1, 32>}, {pipeline_mode = #tpu.pipeline_mode<synchronous>, transform_indices = @transform_12, window_bounds = array<i64: 1, 1>}]} {
    %c0_i32 = arith.constant 0 : i32
    %0 = arith.cmpi eq, %arg0, %c0_i32 : i32
    %1 = arith.extui %0 : i1 to i32
    %c0_i32_0 = arith.constant 0 : i32
    %2 = arith.cmpi ne, %1, %c0_i32_0 : i32
    scf.if %2 {
      %cst_111 = arith.constant 0.000000e+00 : f32
      %257 = vector.broadcast %cst_111 : f32 to vector<1x1xf32>
      %c0_112 = arith.constant 0 : index
      %c0_113 = arith.constant 0 : index
      %258 = vector.load %arg14[%c0_112, %c0_113] : memref<1x1xf32, #tpu.memory_space<vmem>>, vector<1x1xf32>
      tpu.vector_store %arg14[%c0_112, %c0_113], %257 {strides = array<i32>} : memref<1x1xf32, #tpu.memory_space<vmem>>, vector<1x1xf32>,
      %cst_114 = arith.constant 0.000000e+00 : f32
      %259 = vector.broadcast %cst_114 : f32 to vector<1x1xf32>
      %c0_115 = arith.constant 0 : index
      %c0_116 = arith.constant 0 : index
      %260 = vector.load %arg15[%c0_115, %c0_116] : memref<1x1xf32, #tpu.memory_space<vmem>>, vector<1x1xf32>
      tpu.vector_store %arg15[%c0_115, %c0_116], %259 {strides = array<i32>} : memref<1x1xf32, #tpu.memory_space<vmem>>, vector<1x1xf32>,
    } else {
    }
    %c0 = arith.constant 0 : index
    %c0_1 = arith.constant 0 : index
    %3 = vector.load %arg1[%c0, %c0_1] : memref<2x32xf32, #tpu.memory_space<vmem>>, vector<2x32xf32>
    %c0_2 = arith.constant 0 : index
    %c0_3 = arith.constant 0 : index
    %4 = vector.load %arg5[%c0_2, %c0_3] : memref<32x32xf32, #tpu.memory_space<vmem>>, vector<32x32xf32>
    %cst = arith.constant dense<0.000000e+00> : vector<2x32xf32>
    %5 = tpu.matmul %3, %4, %cst {dimension_numbers = #tpu.dot_dimension_numbers<[1], [0], [0], [1], [0, 0, 1, 1], [], []>} : vector<2x32xf32>, vector<32x32xf32>, vector<2x32xf32> -> vector<2x32xf32>
    %c0_4 = arith.constant 0 : index
    %c0_5 = arith.constant 0 : index
    %6 = vector.load %arg3[%c0_4, %c0_5] : memref<32x4xf32, #tpu.memory_space<vmem>>, vector<32x4xf32>
    %cst_6 = arith.constant dense<0.000000e+00> : vector<2x4xf32>
    %7 = tpu.matmul %3, %6, %cst_6 {dimension_numbers = #tpu.dot_dimension_numbers<[1], [0], [0], [1], [0, 0, 1, 1], [], []>} : vector<2x32xf32>, vector<32x4xf32>, vector<2x4xf32> -> vector<2x4xf32>
    %c0_7 = arith.constant 0 : index
    %c0_8 = arith.constant 0 : index
    %8 = vector.load %arg4[%c0_7, %c0_8] : memref<1x4xf32, #tpu.memory_space<vmem>>, vector<1x4xf32>
    %9 = vector.broadcast %8 : vector<1x4xf32> to vector<2x4xf32>
    %10 = arith.addf %7, %9 : vector<2x4xf32>
    %cst_9 = arith.constant dense<0xFF800000> : vector<2xf32>
    %11 = vector.multi_reduction <maximumf>, %10, %cst_9 [1] : vector<2x4xf32> to vector<2xf32>
    %12 = vector.shape_cast %11 : vector<2xf32> to vector<2x1xf32>
    %13 = vector.broadcast %12 : vector<2x1xf32> to vector<2x4xf32>
    %14 = arith.subf %10, %13 : vector<2x4xf32>
    %15 = math.exp %14 : vector<2x4xf32>
    %cst_10 = arith.constant dense<0.000000e+00> : vector<2xf32>
    %16 = vector.multi_reduction <add>, %15, %cst_10 [1] : vector<2x4xf32> to vector<2xf32>
    %17 = vector.shape_cast %16 : vector<2xf32> to vector<2x1xf32>
    %18 = vector.broadcast %17 : vector<2x1xf32> to vector<2x4xf32>
    %19 = arith.divf %15, %18 : vector<2x4xf32>
    %cst_11 = arith.constant 9.99999993E-9 : f32
    %20 = vector.broadcast %cst_11 : f32 to vector<2x4xf32>
    %21 = arith.addf %19, %20 : vector<2x4xf32>
    %22 = math.log %21 : vector<2x4xf32>
    %23 = arith.mulf %19, %22 : vector<2x4xf32>
    %cst_12 = arith.constant dense<0.000000e+00> : vector<2xf32>
    %24 = vector.multi_reduction <add>, %23, %cst_12 [1] : vector<2x4xf32> to vector<2xf32>
    %25 = vector.shape_cast %24 : vector<2xf32> to vector<2x1xf32>
    %cst_13 = arith.constant 0.000000e+00 : f32
    %26 = vector.broadcast %cst_13 : f32 to vector<2x1xf32>
    %27 = arith.subf %26, %25 : vector<2x1xf32>
    %c0_14 = arith.constant 0 : index
    %c0_15 = arith.constant 0 : index
    %28 = vector.load %arg7[%c0_14, %c0_15] : memref<32x32xf32, #tpu.memory_space<vmem>>, vector<32x32xf32>
    %c0_16 = arith.constant 0 : index
    %c0_17 = arith.constant 0 : index
    %29 = vector.load %arg9[%c0_16, %c0_17] : memref<16x32xf32, #tpu.memory_space<vmem>>, vector<16x32xf32>
    %c0_18 = arith.constant 0 : index
    %c0_19 = arith.constant 0 : index
    %30 = vector.load %arg11[%c0_18, %c0_19] : memref<32x32xf32, #tpu.memory_space<vmem>>, vector<32x32xf32>
    %c0_20 = arith.constant 0 : index
    %c0_21 = arith.constant 0 : index
    %31 = vector.load %arg8[%c0_20, %c0_21] : memref<1x32xf32, #tpu.memory_space<vmem>>, vector<1x32xf32>
    %c0_22 = arith.constant 0 : index
    %c0_23 = arith.constant 0 : index
    %32 = vector.load %arg12[%c0_22, %c0_23] : memref<1x32xf32, #tpu.memory_space<vmem>>, vector<1x32xf32>
    %cst_24 = arith.constant 0.000000e+00 : f32
    %33 = vector.broadcast %cst_24 : f32 to vector<1x1xf32>
    %cst_25 = arith.constant 0.000000e+00 : f32
    %34 = vector.broadcast %cst_25 : f32 to vector<2x1xf32>
    %c0_26 = arith.constant 0 : index
    %c0_27 = arith.constant 0 : index
    %35 = vector.load %arg6[%c0_26, %c0_27] : memref<4x32xf32, #tpu.memory_space<vmem>>, vector<1x32xf32>
    %36 = vector.broadcast %35 : vector<1x32xf32> to vector<2x32xf32>
    %37 = arith.addf %5, %36 : vector<2x32xf32>
    %cst_28 = arith.constant 0.000000e+00 : f32
    %38 = vector.broadcast %cst_28 : f32 to vector<2x32xf32>
    %39 = arith.maximumf %37, %38 : vector<2x32xf32>
    %cst_29 = arith.constant dense<0.000000e+00> : vector<2x32xf32>
    %40 = tpu.matmul %39, %28, %cst_29 {dimension_numbers = #tpu.dot_dimension_numbers<[1], [0], [0], [1], [0, 0, 1, 1], [], []>} : vector<2x32xf32>, vector<32x32xf32>, vector<2x32xf32> -> vector<2x32xf32>
    %41 = vector.broadcast %31 : vector<1x32xf32> to vector<2x32xf32>
    %42 = arith.addf %40, %41 : vector<2x32xf32>
    %43 = vector.extract_strided_slice %42 {offsets = [0, 0], sizes = [2, 16], strides = [1, 1]} : vector<2x32xf32> to vector<2x16xf32>
    %44 = vector.extract_strided_slice %42 {offsets = [0, 16], sizes = [2, 16], strides = [1, 1]} : vector<2x32xf32> to vector<2x16xf32>
    %c0_30 = arith.constant 0 : index
    %c0_31 = arith.constant 0 : index
    %c0_32 = arith.constant 0 : index
    %45 = vector.load %arg2[%c0_30, %c0_31, %c0_32] : memref<2x4x16xf32, #tpu.memory_space<vmem>>, vector<2x1x16xf32>
    %46 = vector.shape_cast %45 : vector<2x1x16xf32> to vector<2x16xf32>
    %cst_33 = arith.constant 5.000000e-01 : f32
    %47 = vector.broadcast %cst_33 : f32 to vector<2x16xf32>
    %48 = arith.mulf %47, %44 : vector<2x16xf32>
    %49 = math.exp %48 : vector<2x16xf32>
    %50 = arith.mulf %49, %46 : vector<2x16xf32>
    %51 = arith.addf %43, %50 : vector<2x16xf32>
    %52 = arith.mulf %51, %51 : vector<2x16xf32>
    %53 = arith.subf %52, %44 : vector<2x16xf32>
    %54 = arith.mulf %46, %46 : vector<2x16xf32>
    %55 = arith.subf %53, %54 : vector<2x16xf32>
    %cst_34 = arith.constant 5.000000e-01 : f32
    %56 = vector.broadcast %cst_34 : f32 to vector<2x16xf32>
    %57 = arith.mulf %56, %55 : vector<2x16xf32>
    %cst_35 = arith.constant dense<0.000000e+00> : vector<2xf32>
    %58 = vector.multi_reduction <add>, %57, %cst_35 [1] : vector<2x16xf32> to vector<2xf32>
    %59 = vector.shape_cast %58 : vector<2xf32> to vector<2x1xf32>
    %cst_36 = arith.constant dense<0.000000e+00> : vector<2x32xf32>
    %60 = tpu.matmul %51, %29, %cst_36 {dimension_numbers = #tpu.dot_dimension_numbers<[1], [0], [0], [1], [0, 0, 1, 1], [], []>} : vector<2x16xf32>, vector<16x32xf32>, vector<2x32xf32> -> vector<2x32xf32>
    %c0_37 = arith.constant 0 : index
    %c0_38 = arith.constant 0 : index
    %61 = vector.load %arg10[%c0_37, %c0_38] : memref<4x32xf32, #tpu.memory_space<vmem>>, vector<1x32xf32>
    %62 = vector.broadcast %61 : vector<1x32xf32> to vector<2x32xf32>
    %63 = arith.addf %60, %62 : vector<2x32xf32>
    %cst_39 = arith.constant 0.000000e+00 : f32
    %64 = vector.broadcast %cst_39 : f32 to vector<2x32xf32>
    %65 = arith.maximumf %63, %64 : vector<2x32xf32>
    %cst_40 = arith.constant dense<0.000000e+00> : vector<2x32xf32>
    %66 = tpu.matmul %65, %30, %cst_40 {dimension_numbers = #tpu.dot_dimension_numbers<[1], [0], [0], [1], [0, 0, 1, 1], [], []>} : vector<2x32xf32>, vector<32x32xf32>, vector<2x32xf32> -> vector<2x32xf32>
    %67 = vector.broadcast %32 : vector<1x32xf32> to vector<2x32xf32>
    %68 = arith.addf %66, %67 : vector<2x32xf32>
    %cst_41 = arith.constant 0.000000e+00 : f32
    %69 = vector.broadcast %cst_41 : f32 to vector<2x32xf32>
    %70 = arith.maximumf %68, %69 : vector<2x32xf32>
    %71 = arith.mulf %3, %68 : vector<2x32xf32>
    %72 = arith.subf %70, %71 : vector<2x32xf32>
    %73 = math.absf %68 : vector<2x32xf32>
    %cst_42 = arith.constant 0.000000e+00 : f32
    %74 = vector.broadcast %cst_42 : f32 to vector<2x32xf32>
    %75 = arith.subf %74, %73 : vector<2x32xf32>
    %76 = math.exp %75 : vector<2x32xf32>
    %77 = math.log1p %76 : vector<2x32xf32>
    %78 = arith.addf %72, %77 : vector<2x32xf32>
    %cst_43 = arith.constant dense<0.000000e+00> : vector<2xf32>
    %79 = vector.multi_reduction <add>, %78, %cst_43 [1] : vector<2x32xf32> to vector<2xf32>
    %80 = vector.shape_cast %79 : vector<2xf32> to vector<2x1xf32>
    %cst_44 = arith.constant dense<0.000000e+00> : vector<1xf32>
    %81 = vector.multi_reduction <add>, %80, %cst_44 [0] : vector<2x1xf32> to vector<1xf32>
    %82 = vector.shape_cast %81 : vector<1xf32> to vector<1x1xf32>
    %83 = arith.addf %33, %82 : vector<1x1xf32>
    %84 = vector.extract_strided_slice %19 {offsets = [0, 0], sizes = [2, 1], strides = [1, 1]} : vector<2x4xf32> to vector<2x1xf32>
    %85 = arith.mulf %84, %59 : vector<2x1xf32>
    %86 = arith.addf %34, %85 : vector<2x1xf32>
    %c1 = arith.constant 1 : index
    %c0_45 = arith.constant 0 : index
    %87 = vector.load %arg6[%c1, %c0_45] : memref<4x32xf32, #tpu.memory_space<vmem>>, vector<1x32xf32>
    %88 = vector.broadcast %87 : vector<1x32xf32> to vector<2x32xf32>
    %89 = arith.addf %5, %88 : vector<2x32xf32>
    %cst_46 = arith.constant 0.000000e+00 : f32
    %90 = vector.broadcast %cst_46 : f32 to vector<2x32xf32>
    %91 = arith.maximumf %89, %90 : vector<2x32xf32>
    %cst_47 = arith.constant dense<0.000000e+00> : vector<2x32xf32>
    %92 = tpu.matmul %91, %28, %cst_47 {dimension_numbers = #tpu.dot_dimension_numbers<[1], [0], [0], [1], [0, 0, 1, 1], [], []>} : vector<2x32xf32>, vector<32x32xf32>, vector<2x32xf32> -> vector<2x32xf32>
    %93 = vector.broadcast %31 : vector<1x32xf32> to vector<2x32xf32>
    %94 = arith.addf %92, %93 : vector<2x32xf32>
    %95 = vector.extract_strided_slice %94 {offsets = [0, 0], sizes = [2, 16], strides = [1, 1]} : vector<2x32xf32> to vector<2x16xf32>
    %96 = vector.extract_strided_slice %94 {offsets = [0, 16], sizes = [2, 16], strides = [1, 1]} : vector<2x32xf32> to vector<2x16xf32>
    %c0_48 = arith.constant 0 : index
    %c1_49 = arith.constant 1 : index
    %c0_50 = arith.constant 0 : index
    %97 = vector.load %arg2[%c0_48, %c1_49, %c0_50] : memref<2x4x16xf32, #tpu.memory_space<vmem>>, vector<2x1x16xf32>
    %98 = vector.shape_cast %97 : vector<2x1x16xf32> to vector<2x16xf32>
    %cst_51 = arith.constant 5.000000e-01 : f32
    %99 = vector.broadcast %cst_51 : f32 to vector<2x16xf32>
    %100 = arith.mulf %99, %96 : vector<2x16xf32>
    %101 = math.exp %100 : vector<2x16xf32>
    %102 = arith.mulf %101, %98 : vector<2x16xf32>
    %103 = arith.addf %95, %102 : vector<2x16xf32>
    %104 = arith.mulf %103, %103 : vector<2x16xf32>
    %105 = arith.subf %104, %96 : vector<2x16xf32>
    %106 = arith.mulf %98, %98 : vector<2x16xf32>
    %107 = arith.subf %105, %106 : vector<2x16xf32>
    %cst_52 = arith.constant 5.000000e-01 : f32
    %108 = vector.broadcast %cst_52 : f32 to vector<2x16xf32>
    %109 = arith.mulf %108, %107 : vector<2x16xf32>
    %cst_53 = arith.constant dense<0.000000e+00> : vector<2xf32>
    %110 = vector.multi_reduction <add>, %109, %cst_53 [1] : vector<2x16xf32> to vector<2xf32>
    %111 = vector.shape_cast %110 : vector<2xf32> to vector<2x1xf32>
    %cst_54 = arith.constant dense<0.000000e+00> : vector<2x32xf32>
    %112 = tpu.matmul %103, %29, %cst_54 {dimension_numbers = #tpu.dot_dimension_numbers<[1], [0], [0], [1], [0, 0, 1, 1], [], []>} : vector<2x16xf32>, vector<16x32xf32>, vector<2x32xf32> -> vector<2x32xf32>
    %c1_55 = arith.constant 1 : index
    %c0_56 = arith.constant 0 : index
    %113 = vector.load %arg10[%c1_55, %c0_56] : memref<4x32xf32, #tpu.memory_space<vmem>>, vector<1x32xf32>
    %114 = vector.broadcast %113 : vector<1x32xf32> to vector<2x32xf32>
    %115 = arith.addf %112, %114 : vector<2x32xf32>
    %cst_57 = arith.constant 0.000000e+00 : f32
    %116 = vector.broadcast %cst_57 : f32 to vector<2x32xf32>
    %117 = arith.maximumf %115, %116 : vector<2x32xf32>
    %cst_58 = arith.constant dense<0.000000e+00> : vector<2x32xf32>
    %118 = tpu.matmul %117, %30, %cst_58 {dimension_numbers = #tpu.dot_dimension_numbers<[1], [0], [0], [1], [0, 0, 1, 1], [], []>} : vector<2x32xf32>, vector<32x32xf32>, vector<2x32xf32> -> vector<2x32xf32>
    %119 = vector.broadcast %32 : vector<1x32xf32> to vector<2x32xf32>
    %120 = arith.addf %118, %119 : vector<2x32xf32>
    %cst_59 = arith.constant 0.000000e+00 : f32
    %121 = vector.broadcast %cst_59 : f32 to vector<2x32xf32>
    %122 = arith.maximumf %120, %121 : vector<2x32xf32>
    %123 = arith.mulf %3, %120 : vector<2x32xf32>
    %124 = arith.subf %122, %123 : vector<2x32xf32>
    %125 = math.absf %120 : vector<2x32xf32>
    %cst_60 = arith.constant 0.000000e+00 : f32
    %126 = vector.broadcast %cst_60 : f32 to vector<2x32xf32>
    %127 = arith.subf %126, %125 : vector<2x32xf32>
    %128 = math.exp %127 : vector<2x32xf32>
    %129 = math.log1p %128 : vector<2x32xf32>
    %130 = arith.addf %124, %129 : vector<2x32xf32>
    %cst_61 = arith.constant dense<0.000000e+00> : vector<2xf32>
    %131 = vector.multi_reduction <add>, %130, %cst_61 [1] : vector<2x32xf32> to vector<2xf32>
    %132 = vector.shape_cast %131 : vector<2xf32> to vector<2x1xf32>
    %cst_62 = arith.constant dense<0.000000e+00> : vector<1xf32>
    %133 = vector.multi_reduction <add>, %132, %cst_62 [0] : vector<2x1xf32> to vector<1xf32>
    %134 = vector.shape_cast %133 : vector<1xf32> to vector<1x1xf32>
    %135 = arith.addf %83, %134 : vector<1x1xf32>
    %136 = vector.extract_strided_slice %19 {offsets = [0, 1], sizes = [2, 1], strides = [1, 1]} : vector<2x4xf32> to vector<2x1xf32>
    %137 = arith.mulf %136, %111 : vector<2x1xf32>
    %138 = arith.addf %86, %137 : vector<2x1xf32>
    %c2 = arith.constant 2 : index
    %c0_63 = arith.constant 0 : index
    %139 = vector.load %arg6[%c2, %c0_63] : memref<4x32xf32, #tpu.memory_space<vmem>>, vector<1x32xf32>
    %140 = vector.broadcast %139 : vector<1x32xf32> to vector<2x32xf32>
    %141 = arith.addf %5, %140 : vector<2x32xf32>
    %cst_64 = arith.constant 0.000000e+00 : f32
    %142 = vector.broadcast %cst_64 : f32 to vector<2x32xf32>
    %143 = arith.maximumf %141, %142 : vector<2x32xf32>
    %cst_65 = arith.constant dense<0.000000e+00> : vector<2x32xf32>
    %144 = tpu.matmul %143, %28, %cst_65 {dimension_numbers = #tpu.dot_dimension_numbers<[1], [0], [0], [1], [0, 0, 1, 1], [], []>} : vector<2x32xf32>, vector<32x32xf32>, vector<2x32xf32> -> vector<2x32xf32>
    %145 = vector.broadcast %31 : vector<1x32xf32> to vector<2x32xf32>
    %146 = arith.addf %144, %145 : vector<2x32xf32>
    %147 = vector.extract_strided_slice %146 {offsets = [0, 0], sizes = [2, 16], strides = [1, 1]} : vector<2x32xf32> to vector<2x16xf32>
    %148 = vector.extract_strided_slice %146 {offsets = [0, 16], sizes = [2, 16], strides = [1, 1]} : vector<2x32xf32> to vector<2x16xf32>
    %c0_66 = arith.constant 0 : index
    %c2_67 = arith.constant 2 : index
    %c0_68 = arith.constant 0 : index
    %149 = vector.load %arg2[%c0_66, %c2_67, %c0_68] : memref<2x4x16xf32, #tpu.memory_space<vmem>>, vector<2x1x16xf32>
    %150 = vector.shape_cast %149 : vector<2x1x16xf32> to vector<2x16xf32>
    %cst_69 = arith.constant 5.000000e-01 : f32
    %151 = vector.broadcast %cst_69 : f32 to vector<2x16xf32>
    %152 = arith.mulf %151, %148 : vector<2x16xf32>
    %153 = math.exp %152 : vector<2x16xf32>
    %154 = arith.mulf %153, %150 : vector<2x16xf32>
    %155 = arith.addf %147, %154 : vector<2x16xf32>
    %156 = arith.mulf %155, %155 : vector<2x16xf32>
    %157 = arith.subf %156, %148 : vector<2x16xf32>
    %158 = arith.mulf %150, %150 : vector<2x16xf32>
    %159 = arith.subf %157, %158 : vector<2x16xf32>
    %cst_70 = arith.constant 5.000000e-01 : f32
    %160 = vector.broadcast %cst_70 : f32 to vector<2x16xf32>
    %161 = arith.mulf %160, %159 : vector<2x16xf32>
    %cst_71 = arith.constant dense<0.000000e+00> : vector<2xf32>
    %162 = vector.multi_reduction <add>, %161, %cst_71 [1] : vector<2x16xf32> to vector<2xf32>
    %163 = vector.shape_cast %162 : vector<2xf32> to vector<2x1xf32>
    %cst_72 = arith.constant dense<0.000000e+00> : vector<2x32xf32>
    %164 = tpu.matmul %155, %29, %cst_72 {dimension_numbers = #tpu.dot_dimension_numbers<[1], [0], [0], [1], [0, 0, 1, 1], [], []>} : vector<2x16xf32>, vector<16x32xf32>, vector<2x32xf32> -> vector<2x32xf32>
    %c2_73 = arith.constant 2 : index
    %c0_74 = arith.constant 0 : index
    %165 = vector.load %arg10[%c2_73, %c0_74] : memref<4x32xf32, #tpu.memory_space<vmem>>, vector<1x32xf32>
    %166 = vector.broadcast %165 : vector<1x32xf32> to vector<2x32xf32>
    %167 = arith.addf %164, %166 : vector<2x32xf32>
    %cst_75 = arith.constant 0.000000e+00 : f32
    %168 = vector.broadcast %cst_75 : f32 to vector<2x32xf32>
    %169 = arith.maximumf %167, %168 : vector<2x32xf32>
    %cst_76 = arith.constant dense<0.000000e+00> : vector<2x32xf32>
    %170 = tpu.matmul %169, %30, %cst_76 {dimension_numbers = #tpu.dot_dimension_numbers<[1], [0], [0], [1], [0, 0, 1, 1], [], []>} : vector<2x32xf32>, vector<32x32xf32>, vector<2x32xf32> -> vector<2x32xf32>
    %171 = vector.broadcast %32 : vector<1x32xf32> to vector<2x32xf32>
    %172 = arith.addf %170, %171 : vector<2x32xf32>
    %cst_77 = arith.constant 0.000000e+00 : f32
    %173 = vector.broadcast %cst_77 : f32 to vector<2x32xf32>
    %174 = arith.maximumf %172, %173 : vector<2x32xf32>
    %175 = arith.mulf %3, %172 : vector<2x32xf32>
    %176 = arith.subf %174, %175 : vector<2x32xf32>
    %177 = math.absf %172 : vector<2x32xf32>
    %cst_78 = arith.constant 0.000000e+00 : f32
    %178 = vector.broadcast %cst_78 : f32 to vector<2x32xf32>
    %179 = arith.subf %178, %177 : vector<2x32xf32>
    %180 = math.exp %179 : vector<2x32xf32>
    %181 = math.log1p %180 : vector<2x32xf32>
    %182 = arith.addf %176, %181 : vector<2x32xf32>
    %cst_79 = arith.constant dense<0.000000e+00> : vector<2xf32>
    %183 = vector.multi_reduction <add>, %182, %cst_79 [1] : vector<2x32xf32> to vector<2xf32>
    %184 = vector.shape_cast %183 : vector<2xf32> to vector<2x1xf32>
    %cst_80 = arith.constant dense<0.000000e+00> : vector<1xf32>
    %185 = vector.multi_reduction <add>, %184, %cst_80 [0] : vector<2x1xf32> to vector<1xf32>
    %186 = vector.shape_cast %185 : vector<1xf32> to vector<1x1xf32>
    %187 = arith.addf %135, %186 : vector<1x1xf32>
    %188 = vector.extract_strided_slice %19 {offsets = [0, 2], sizes = [2, 1], strides = [1, 1]} : vector<2x4xf32> to vector<2x1xf32>
    %189 = arith.mulf %188, %163 : vector<2x1xf32>
    %190 = arith.addf %138, %189 : vector<2x1xf32>
    %c3 = arith.constant 3 : index
    %c0_81 = arith.constant 0 : index
    %191 = vector.load %arg6[%c3, %c0_81] : memref<4x32xf32, #tpu.memory_space<vmem>>, vector<1x32xf32>
    %192 = vector.broadcast %191 : vector<1x32xf32> to vector<2x32xf32>
    %193 = arith.addf %5, %192 : vector<2x32xf32>
    %cst_82 = arith.constant 0.000000e+00 : f32
    %194 = vector.broadcast %cst_82 : f32 to vector<2x32xf32>
    %195 = arith.maximumf %193, %194 : vector<2x32xf32>
    %cst_83 = arith.constant dense<0.000000e+00> : vector<2x32xf32>
    %196 = tpu.matmul %195, %28, %cst_83 {dimension_numbers = #tpu.dot_dimension_numbers<[1], [0], [0], [1], [0, 0, 1, 1], [], []>} : vector<2x32xf32>, vector<32x32xf32>, vector<2x32xf32> -> vector<2x32xf32>
    %197 = vector.broadcast %31 : vector<1x32xf32> to vector<2x32xf32>
    %198 = arith.addf %196, %197 : vector<2x32xf32>
    %199 = vector.extract_strided_slice %198 {offsets = [0, 0], sizes = [2, 16], strides = [1, 1]} : vector<2x32xf32> to vector<2x16xf32>
    %200 = vector.extract_strided_slice %198 {offsets = [0, 16], sizes = [2, 16], strides = [1, 1]} : vector<2x32xf32> to vector<2x16xf32>
    %c0_84 = arith.constant 0 : index
    %c3_85 = arith.constant 3 : index
    %c0_86 = arith.constant 0 : index
    %201 = vector.load %arg2[%c0_84, %c3_85, %c0_86] : memref<2x4x16xf32, #tpu.memory_space<vmem>>, vector<2x1x16xf32>
    %202 = vector.shape_cast %201 : vector<2x1x16xf32> to vector<2x16xf32>
    %cst_87 = arith.constant 5.000000e-01 : f32
    %203 = vector.broadcast %cst_87 : f32 to vector<2x16xf32>
    %204 = arith.mulf %203, %200 : vector<2x16xf32>
    %205 = math.exp %204 : vector<2x16xf32>
    %206 = arith.mulf %205, %202 : vector<2x16xf32>
    %207 = arith.addf %199, %206 : vector<2x16xf32>
    %208 = arith.mulf %207, %207 : vector<2x16xf32>
    %209 = arith.subf %208, %200 : vector<2x16xf32>
    %210 = arith.mulf %202, %202 : vector<2x16xf32>
    %211 = arith.subf %209, %210 : vector<2x16xf32>
    %cst_88 = arith.constant 5.000000e-01 : f32
    %212 = vector.broadcast %cst_88 : f32 to vector<2x16xf32>
    %213 = arith.mulf %212, %211 : vector<2x16xf32>
    %cst_89 = arith.constant dense<0.000000e+00> : vector<2xf32>
    %214 = vector.multi_reduction <add>, %213, %cst_89 [1] : vector<2x16xf32> to vector<2xf32>
    %215 = vector.shape_cast %214 : vector<2xf32> to vector<2x1xf32>
    %cst_90 = arith.constant dense<0.000000e+00> : vector<2x32xf32>
    %216 = tpu.matmul %207, %29, %cst_90 {dimension_numbers = #tpu.dot_dimension_numbers<[1], [0], [0], [1], [0, 0, 1, 1], [], []>} : vector<2x16xf32>, vector<16x32xf32>, vector<2x32xf32> -> vector<2x32xf32>
    %c3_91 = arith.constant 3 : index
    %c0_92 = arith.constant 0 : index
    %217 = vector.load %arg10[%c3_91, %c0_92] : memref<4x32xf32, #tpu.memory_space<vmem>>, vector<1x32xf32>
    %218 = vector.broadcast %217 : vector<1x32xf32> to vector<2x32xf32>
    %219 = arith.addf %216, %218 : vector<2x32xf32>
    %cst_93 = arith.constant 0.000000e+00 : f32
    %220 = vector.broadcast %cst_93 : f32 to vector<2x32xf32>
    %221 = arith.maximumf %219, %220 : vector<2x32xf32>
    %cst_94 = arith.constant dense<0.000000e+00> : vector<2x32xf32>
    %222 = tpu.matmul %221, %30, %cst_94 {dimension_numbers = #tpu.dot_dimension_numbers<[1], [0], [0], [1], [0, 0, 1, 1], [], []>} : vector<2x32xf32>, vector<32x32xf32>, vector<2x32xf32> -> vector<2x32xf32>
    %223 = vector.broadcast %32 : vector<1x32xf32> to vector<2x32xf32>
    %224 = arith.addf %222, %223 : vector<2x32xf32>
    %cst_95 = arith.constant 0.000000e+00 : f32
    %225 = vector.broadcast %cst_95 : f32 to vector<2x32xf32>
    %226 = arith.maximumf %224, %225 : vector<2x32xf32>
    %227 = arith.mulf %3, %224 : vector<2x32xf32>
    %228 = arith.subf %226, %227 : vector<2x32xf32>
    %229 = math.absf %224 : vector<2x32xf32>
    %cst_96 = arith.constant 0.000000e+00 : f32
    %230 = vector.broadcast %cst_96 : f32 to vector<2x32xf32>
    %231 = arith.subf %230, %229 : vector<2x32xf32>
    %232 = math.exp %231 : vector<2x32xf32>
    %233 = math.log1p %232 : vector<2x32xf32>
    %234 = arith.addf %228, %233 : vector<2x32xf32>
    %cst_97 = arith.constant dense<0.000000e+00> : vector<2xf32>
    %235 = vector.multi_reduction <add>, %234, %cst_97 [1] : vector<2x32xf32> to vector<2xf32>
    %236 = vector.shape_cast %235 : vector<2xf32> to vector<2x1xf32>
    %cst_98 = arith.constant dense<0.000000e+00> : vector<1xf32>
    %237 = vector.multi_reduction <add>, %236, %cst_98 [0] : vector<2x1xf32> to vector<1xf32>
    %238 = vector.shape_cast %237 : vector<1xf32> to vector<1x1xf32>
    %239 = arith.addf %187, %238 : vector<1x1xf32>
    %240 = vector.extract_strided_slice %19 {offsets = [0, 3], sizes = [2, 1], strides = [1, 1]} : vector<2x4xf32> to vector<2x1xf32>
    %241 = arith.mulf %240, %215 : vector<2x1xf32>
    %242 = arith.addf %190, %241 : vector<2x1xf32>
    %c0_99 = arith.constant 0 : index
    %c0_100 = arith.constant 0 : index
    %243 = vector.load %arg14[%c0_99, %c0_100] : memref<1x1xf32, #tpu.memory_space<vmem>>, vector<1x1xf32>
    %244 = arith.addf %243, %239 : vector<1x1xf32>
    %c0_101 = arith.constant 0 : index
    %c0_102 = arith.constant 0 : index
    %245 = vector.load %arg14[%c0_101, %c0_102] : memref<1x1xf32, #tpu.memory_space<vmem>>, vector<1x1xf32>
    tpu.vector_store %arg14[%c0_101, %c0_102], %244 {strides = array<i32>} : memref<1x1xf32, #tpu.memory_space<vmem>>, vector<1x1xf32>,
    %c0_103 = arith.constant 0 : index
    %c0_104 = arith.constant 0 : index
    %246 = vector.load %arg15[%c0_103, %c0_104] : memref<1x1xf32, #tpu.memory_space<vmem>>, vector<1x1xf32>
    %cst_105 = arith.constant 1.000000e+00 : f32
    %247 = vector.broadcast %cst_105 : f32 to vector<2x1xf32>
    %248 = arith.mulf %247, %242 : vector<2x1xf32>
    %249 = arith.subf %27, %248 : vector<2x1xf32>
    %cst_106 = arith.constant dense<0.000000e+00> : vector<1xf32>
    %250 = vector.multi_reduction <add>, %249, %cst_106 [0] : vector<2x1xf32> to vector<1xf32>
    %251 = vector.shape_cast %250 : vector<1xf32> to vector<1x1xf32>
    %252 = arith.addf %246, %251 : vector<1x1xf32>
    %c0_107 = arith.constant 0 : index
    %c0_108 = arith.constant 0 : index
    %253 = vector.load %arg15[%c0_107, %c0_108] : memref<1x1xf32, #tpu.memory_space<vmem>>, vector<1x1xf32>
    tpu.vector_store %arg15[%c0_107, %c0_108], %252 {strides = array<i32>} : memref<1x1xf32, #tpu.memory_space<vmem>>, vector<1x1xf32>,
    %c0_i32_109 = arith.constant 0 : i32
    %254 = arith.cmpi eq, %arg0, %c0_i32_109 : i32
    %255 = arith.extui %254 : i1 to i32
    %c0_i32_110 = arith.constant 0 : i32
    %256 = arith.cmpi ne, %255, %c0_i32_110 : i32
    scf.if %256 {
      %c0_111 = arith.constant 0 : index
      %c0_112 = arith.constant 0 : index
      %257 = vector.load %arg14[%c0_111, %c0_112] : memref<1x1xf32, #tpu.memory_space<vmem>>, vector<1x1xf32>
      %cst_113 = arith.constant 0.000000e+00 : f32
      %258 = vector.broadcast %cst_113 : f32 to vector<1x1xf32>
      %259 = arith.subf %258, %257 : vector<1x1xf32>
      %cst_114 = arith.constant 3.906250e-03 : f32
      %260 = vector.broadcast %cst_114 : f32 to vector<1x1xf32>
      %261 = arith.mulf %259, %260 : vector<1x1xf32>
      %cst_115 = arith.constant -1.38629436 : f32
      %262 = vector.broadcast %cst_115 : f32 to vector<1x1xf32>
      %263 = arith.addf %262, %261 : vector<1x1xf32>
      %c0_116 = arith.constant 0 : index
      %c0_117 = arith.constant 0 : index
      %264 = vector.load %arg15[%c0_116, %c0_117] : memref<1x1xf32, #tpu.memory_space<vmem>>, vector<1x1xf32>
      %cst_118 = arith.constant 5.000000e-01 : f32
      %265 = vector.broadcast %cst_118 : f32 to vector<1x1xf32>
      %266 = arith.mulf %264, %265 : vector<1x1xf32>
      %267 = arith.addf %263, %266 : vector<1x1xf32>
      %c0_119 = arith.constant 0 : index
      %c0_120 = arith.constant 0 : index
      %268 = vector.load %arg13[%c0_119, %c0_120] : memref<1x1xf32, #tpu.memory_space<vmem>>, vector<1x1xf32>
      tpu.vector_store %arg13[%c0_119, %c0_120], %267 {strides = array<i32>} : memref<1x1xf32, #tpu.memory_space<vmem>>, vector<1x1xf32>,
    } else {
    }
    return
  }
  func.func @transform_0(%arg0: i32) -> (i32, i32) {
    %c0_i32 = arith.constant 0 : i32
    %c0_i32_0 = arith.constant 0 : i32
    return %arg0, %c0_i32 : i32, i32
  }
  func.func @transform_1(%arg0: i32) -> (i32, i32, i32) {
    %c0_i32 = arith.constant 0 : i32
    %c0_i32_0 = arith.constant 0 : i32
    %c0_i32_1 = arith.constant 0 : i32
    return %arg0, %c0_i32, %c0_i32_0 : i32, i32, i32
  }
  func.func @transform_2(%arg0: i32) -> (i32, i32) {
    %c0_i32 = arith.constant 0 : i32
    %c0_i32_0 = arith.constant 0 : i32
    %c0_i32_1 = arith.constant 0 : i32
    return %c0_i32, %c0_i32_0 : i32, i32
  }
  func.func @transform_3(%arg0: i32) -> (i32, i32) {
    %c0_i32 = arith.constant 0 : i32
    %c0_i32_0 = arith.constant 0 : i32
    %c0_i32_1 = arith.constant 0 : i32
    return %c0_i32, %c0_i32_0 : i32, i32
  }
  func.func @transform_4(%arg0: i32) -> (i32, i32) {
    %c0_i32 = arith.constant 0 : i32
    %c0_i32_0 = arith.constant 0 : i32
    %c0_i32_1 = arith.constant 0 : i32
    return %c0_i32, %c0_i32_0 : i32, i32
  }
  func.func @transform_5(%arg0: i32) -> (i32, i32) {
    %c0_i32 = arith.constant 0 : i32
    %c0_i32_0 = arith.constant 0 : i32
    %c0_i32_1 = arith.constant 0 : i32
    return %c0_i32, %c0_i32_0 : i32, i32
  }
  func.func @transform_6(%arg0: i32) -> (i32, i32) {
    %c0_i32 = arith.constant 0 : i32
    %c0_i32_0 = arith.constant 0 : i32
    %c0_i32_1 = arith.constant 0 : i32
    return %c0_i32, %c0_i32_0 : i32, i32
  }
  func.func @transform_7(%arg0: i32) -> (i32, i32) {
    %c0_i32 = arith.constant 0 : i32
    %c0_i32_0 = arith.constant 0 : i32
    %c0_i32_1 = arith.constant 0 : i32
    return %c0_i32, %c0_i32_0 : i32, i32
  }
  func.func @transform_8(%arg0: i32) -> (i32, i32) {
    %c0_i32 = arith.constant 0 : i32
    %c0_i32_0 = arith.constant 0 : i32
    %c0_i32_1 = arith.constant 0 : i32
    return %c0_i32, %c0_i32_0 : i32, i32
  }
  func.func @transform_9(%arg0: i32) -> (i32, i32) {
    %c0_i32 = arith.constant 0 : i32
    %c0_i32_0 = arith.constant 0 : i32
    %c0_i32_1 = arith.constant 0 : i32
    return %c0_i32, %c0_i32_0 : i32, i32
  }
  func.func @transform_10(%arg0: i32) -> (i32, i32) {
    %c0_i32 = arith.constant 0 : i32
    %c0_i32_0 = arith.constant 0 : i32
    %c0_i32_1 = arith.constant 0 : i32
    return %c0_i32, %c0_i32_0 : i32, i32
  }
  func.func @transform_11(%arg0: i32) -> (i32, i32) {
    %c0_i32 = arith.constant 0 : i32
    %c0_i32_0 = arith.constant 0 : i32
    %c0_i32_1 = arith.constant 0 : i32
    return %c0_i32, %c0_i32_0 : i32, i32
  }
  func.func @transform_12(%arg0: i32) -> (i32, i32) {
    %c0_i32 = arith.constant 0 : i32
    %c0_i32_0 = arith.constant 0 : i32
    %c0_i32_1 = arith.constant 0 : i32
    return %c0_i32, %c0_i32_0 : i32, i32
  }
}

</mosaic_0001>

<llo_original>
// kernel: tpu_custom_call.1
$region0: #{tpu_custom_call.1}
  #allocation0 [shape = 'u32[]', space=smem, size = 0x4, offset = 0x4, fixed_abs, tag = 'smem constant byte address 0x4 - core index']
  #allocation1 [shape = 'u32[144,128]{1,0:T(1,128)}', space=vmem, size = 0x12000, scoped, tag = 'internal scratch']
  #allocation2 [shape = 'f32[1,1]{1,0:T(1,128)}', space=vmem, size = 0x200, scoped, tag = 'scratch operand']
  #allocation3 [shape = 'f32[1,1]{1,0:T(1,128)}', space=vmem, size = 0x200, scoped, tag = 'scratch operand']
  %s0 = inlined_call_operand.hbm [shape: f32[2,32], index: 0, kind: input, shape index: {}]
  %s1 = inlined_call_operand.hbm [shape: f32[2,4,16], index: 1, kind: input, shape index: {}]
  %s2 = inlined_call_operand.hbm [shape: f32[32,4], index: 2, kind: input, shape index: {}]
  %s3 = inlined_call_operand.hbm [shape: f32[1,4], index: 3, kind: input, shape index: {}]
  %s4 = inlined_call_operand.hbm [shape: f32[32,32], index: 4, kind: input, shape index: {}]
  %s5 = inlined_call_operand.hbm [shape: f32[4,32], index: 5, kind: input, shape index: {}]
  %s6 = inlined_call_operand.hbm [shape: f32[32,32], index: 6, kind: input, shape index: {}]
  %s7 = inlined_call_operand.hbm [shape: f32[1,32], index: 7, kind: input, shape index: {}]
  %s8 = inlined_call_operand.hbm [shape: f32[16,32], index: 8, kind: input, shape index: {}]
  %s9 = inlined_call_operand.hbm [shape: f32[4,32], index: 9, kind: input, shape index: {}]
  %s10 = inlined_call_operand.hbm [shape: f32[32,32], index: 10, kind: input, shape index: {}]
  %s11 = inlined_call_operand.hbm [shape: f32[1,32], index: 11, kind: input, shape index: {}]
  %s12 = inlined_call_operand.hbm [shape: f32[1,1], index: 12, kind: output, shape index: {}]
  %s13 = sld [smem:[#allocation0]]
  $region114: #{tpu_custom_call.1} parent=0
    _
  %s15 = ssub.s32 1, %s13
  %s16 = scalar_select 0, %s15, %s13
  $region1: #{tpu_custom_call.1} parent=0
    #allocation4 [shape = 'u8[1024]{0}', space=vmem, size = 0x400, scoped, tag = 'input window, operand 0, single buffered']
    #allocation5 [shape = 's32[1]{0}', space=sflag, size = 0x4, scoped, tag = 'scoped memory for tpu_custom_call.1']
    #allocation6 [shape = 's32[1]{0}', space=sflag, size = 0x4, scoped, tag = 'scoped memory for tpu_custom_call.1']
    #allocation7 [shape = 'u8[4096]{0}', space=vmem, size = 0x1000, scoped, tag = 'input window, operand 1, single buffered']
    #allocation8 [shape = 's32[1]{0}', space=sflag, size = 0x4, scoped, tag = 'scoped memory for tpu_custom_call.1']
    #allocation9 [shape = 'u8[16384]{0}', space=vmem, size = 0x4000, scoped, tag = 'input window, operand 2, single buffered']
    #allocation10 [shape = 'u8[512]{0}', space=vmem, size = 0x400, scoped, tag = 'input window, operand 3, single buffered']
    #allocation11 [shape = 's32[1]{0}', space=sflag, size = 0x4, scoped, tag = 'scoped memory for tpu_custom_call.1']
    #allocation12 [shape = 'u8[16384]{0}', space=vmem, size = 0x4000, scoped, tag = 'input window, operand 4, single buffered']
    #allocation13 [shape = 'u8[2048]{0}', space=vmem, size = 0x800, scoped, tag = 'input window, operand 5, single buffered']
    #allocation14 [shape = 's32[1]{0}', space=sflag, size = 0x4, scoped, tag = 'scoped memory for tpu_custom_call.1']
    #allocation15 [shape = 'u8[16384]{0}', space=vmem, size = 0x4000, scoped, tag = 'input window, operand 6, single buffered']
    #allocation16 [shape = 'u8[512]{0}', space=vmem, size = 0x400, scoped, tag = 'input window, operand 7, single buffered']
    #allocation17 [shape = 's32[1]{0}', space=sflag, size = 0x4, scoped, tag = 'scoped memory for tpu_custom_call.1']
    #allocation18 [shape = 'u8[8192]{0}', space=vmem, size = 0x2000, scoped, tag = 'input window, operand 8, single buffered']
    #allocation19 [shape = 'u8[2048]{0}', space=vmem, size = 0x800, scoped, tag = 'input window, operand 9, single buffered']
    #allocation20 [shape = 's32[1]{0}', space=sflag, size = 0x4, scoped, tag = 'scoped memory for tpu_custom_call.1']
    #allocation21 [shape = 'u8[16384]{0}', space=vmem, size = 0x4000, scoped, tag = 'input window, operand 10, single buffered']
    #allocation22 [shape = 'u8[512]{0}', space=vmem, size = 0x400, scoped, tag = 'input window, operand 11, single buffered']
    #allocation23 [shape = 's32[1]{0}', space=sflag, size = 0x4, scoped, tag = 'scoped memory for tpu_custom_call.1']
    #allocation24 [shape = 'u8[512]{0}', space=vmem, size = 0x400, scoped, tag = 'output window, operand 0, single buffered']
    %17 = vsyncpa [#allocation5], 0
    %18 = vsyncpa [#allocation8], 0
    %19 = vsyncpa [#allocation11], 0
    %20 = vsyncpa [#allocation14], 0
    %21 = vsyncpa [#allocation17], 0
    %22 = vsyncpa [#allocation20], 0
    %23 = vsyncpa [#allocation23], 0
    %24 = vsyncpa [#allocation6], 0
    // Predicated region
    $region2: #{tpu_custom_call.1} parent=1 // pred_check
      _
    $region3: #{tpu_custom_call.1} parent=1 // pred_check_branch
      %26 = sbr.rel (0) target = $region5
    $region4: #{tpu_custom_call.1} parent=1 // pred_region
      %s28 = ssub.s32 32, 32
      %29 = vsyncadd [#allocation5], %s28
      %s31 = sshll.u32 [#allocation4], 4
      %s32 = int_to_ptr.vmem [resolvable:$true] %s31
      %34 = dma.hbm_to_vmem [thread:$0]  %s0, 32, %s32, [#allocation5]
    $region5: #{tpu_custom_call.1} parent=1 // pred_fallthru
      _
    // Predicated region
    $region6: #{tpu_custom_call.1} parent=1 // pred_check
      _
    $region7: #{tpu_custom_call.1} parent=1 // pred_check_branch
      %36 = sbr.rel (0) target = $region9
    $region8: #{tpu_custom_call.1} parent=1 // pred_region
      %s38 = ssub.s32 128, 128
      %39 = vsyncadd [#allocation8], %s38
      %s40 = sshll.u32 [#allocation7], 4
      %s41 = int_to_ptr.vmem [resolvable:$true] %s40
      %46 = dma.hbm_to_vmem [thread:$0]  %s1, 128, %s41, [#allocation8], 64, 64, 4
    $region9: #{tpu_custom_call.1} parent=1 // pred_fallthru
      _
    // Predicated region
    $region10: #{tpu_custom_call.1} parent=1 // pred_check
      _
    $region11: #{tpu_custom_call.1} parent=1 // pred_check_branch
      %48 = sbr.rel (0) target = $region13
    $region12: #{tpu_custom_call.1} parent=1 // pred_region
      %s50 = ssub.s32 512, 512
      %51 = vsyncadd [#allocation8], %s50
      %s52 = sshll.u32 [#allocation9], 4
      %s53 = int_to_ptr.vmem [resolvable:$true] %s52
      %58 = dma.hbm_to_vmem [thread:$0]  %s2, 512, %s53, [#allocation8], 128, 128, 8
    $region13: #{tpu_custom_call.1} parent=1 // pred_fallthru
      _
    // Predicated region
    $region14: #{tpu_custom_call.1} parent=1 // pred_check
      _
    $region15: #{tpu_custom_call.1} parent=1 // pred_check_branch
      %60 = sbr.rel (0) target = $region17
    $region16: #{tpu_custom_call.1} parent=1 // pred_region
      %s62 = ssub.s32 16, 16
      %63 = vsyncadd [#allocation11], %s62
      %s65 = sshll.u32 [#allocation10], 4
      %s66 = int_to_ptr.vmem [resolvable:$true] %s65
      %68 = dma.hbm_to_vmem [thread:$0]  %s3, 16, %s66, [#allocation11]
    $region17: #{tpu_custom_call.1} parent=1 // pred_fallthru
      _
    // Predicated region
    $region18: #{tpu_custom_call.1} parent=1 // pred_check
      _
    $region19: #{tpu_custom_call.1} parent=1 // pred_check_branch
      %70 = sbr.rel (0) target = $region21
    $region20: #{tpu_custom_call.1} parent=1 // pred_region
      %s72 = ssub.s32 512, 512
      %73 = vsyncadd [#allocation11], %s72
      %s74 = sshll.u32 [#allocation12], 4
      %s75 = int_to_ptr.vmem [resolvable:$true] %s74
      %80 = dma.hbm_to_vmem [thread:$0]  %s4, 512, %s75, [#allocation11], 128, 128, 8
    $region21: #{tpu_custom_call.1} parent=1 // pred_fallthru
      _
    // Predicated region
    $region22: #{tpu_custom_call.1} parent=1 // pred_check
      _
    $region23: #{tpu_custom_call.1} parent=1 // pred_check_branch
      %82 = sbr.rel (0) target = $region25
    $region24: #{tpu_custom_call.1} parent=1 // pred_region
      %s84 = ssub.s32 64, 64
      %85 = vsyncadd [#allocation14], %s84
      %s87 = sshll.u32 [#allocation13], 4
      %s88 = int_to_ptr.vmem [resolvable:$true] %s87
      %90 = dma.hbm_to_vmem [thread:$0]  %s5, 64, %s88, [#allocation14]
    $region25: #{tpu_custom_call.1} parent=1 // pred_fallthru
      _
    // Predicated region
    $region26: #{tpu_custom_call.1} parent=1 // pred_check
      _
    $region27: #{tpu_custom_call.1} parent=1 // pred_check_branch
      %92 = sbr.rel (0) target = $region29
    $region28: #{tpu_custom_call.1} parent=1 // pred_region
      %s94 = ssub.s32 512, 512
      %95 = vsyncadd [#allocation14], %s94
      %s96 = sshll.u32 [#allocation15], 4
      %s97 = int_to_ptr.vmem [resolvable:$true] %s96
      %102 = dma.hbm_to_vmem [thread:$0]  %s6, 512, %s97, [#allocation14], 128, 128, 8
    $region29: #{tpu_custom_call.1} parent=1 // pred_fallthru
      _
    // Predicated region
    $region30: #{tpu_custom_call.1} parent=1 // pred_check
      _
    $region31: #{tpu_custom_call.1} parent=1 // pred_check_branch
      %104 = sbr.rel (0) target = $region33
    $region32: #{tpu_custom_call.1} parent=1 // pred_region
      %s106 = ssub.s32 16, 16
      %107 = vsyncadd [#allocation17], %s106
      %s109 = sshll.u32 [#allocation16], 4
      %s110 = int_to_ptr.vmem [resolvable:$true] %s109
      %112 = dma.hbm_to_vmem [thread:$0]  %s7, 16, %s110, [#allocation17]
    $region33: #{tpu_custom_call.1} parent=1 // pred_fallthru
      _
    // Predicated region
    $region34: #{tpu_custom_call.1} parent=1 // pred_check
      _
    $region35: #{tpu_custom_call.1} parent=1 // pred_check_branch
      %114 = sbr.rel (0) target = $region37
    $region36: #{tpu_custom_call.1} parent=1 // pred_region
      %s116 = ssub.s32 256, 256
      %117 = vsyncadd [#allocation17], %s116
      %s118 = sshll.u32 [#allocation18], 4
      %s119 = int_to_ptr.vmem [resolvable:$true] %s118
      %124 = dma.hbm_to_vmem [thread:$0]  %s8, 256, %s119, [#allocation17], 128, 128, 8
    $region37: #{tpu_custom_call.1} parent=1 // pred_fallthru
      _
    // Predicated region
    $region38: #{tpu_custom_call.1} parent=1 // pred_check
      _
    $region39: #{tpu_custom_call.1} parent=1 // pred_check_branch
      %126 = sbr.rel (0) target = $region41
    $region40: #{tpu_custom_call.1} parent=1 // pred_region
      %s128 = ssub.s32 64, 64
      %129 = vsyncadd [#allocation20], %s128
      %s131 = sshll.u32 [#allocation19], 4
      %s132 = int_to_ptr.vmem [resolvable:$true] %s131
      %134 = dma.hbm_to_vmem [thread:$0]  %s9, 64, %s132, [#allocation20]
    $region41: #{tpu_custom_call.1} parent=1 // pred_fallthru
      _
    // Predicated region
    $region42: #{tpu_custom_call.1} parent=1 // pred_check
      _
    $region43: #{tpu_custom_call.1} parent=1 // pred_check_branch
      %136 = sbr.rel (0) target = $region45
    $region44: #{tpu_custom_call.1} parent=1 // pred_region
      %s138 = ssub.s32 512, 512
      %139 = vsyncadd [#allocation20], %s138
      %s140 = sshll.u32 [#allocation21], 4
      %s141 = int_to_ptr.vmem [resolvable:$true] %s140
      %146 = dma.hbm_to_vmem [thread:$0]  %s10, 512, %s141, [#allocation20], 128, 128, 8
    $region45: #{tpu_custom_call.1} parent=1 // pred_fallthru
      _
    // Predicated region
    $region46: #{tpu_custom_call.1} parent=1 // pred_check
      _
    $region47: #{tpu_custom_call.1} parent=1 // pred_check_branch
      %148 = sbr.rel (0) target = $region49
    $region48: #{tpu_custom_call.1} parent=1 // pred_region
      %s150 = ssub.s32 16, 16
      %151 = vsyncadd [#allocation23], %s150
      %s153 = sshll.u32 [#allocation22], 4
      %s154 = int_to_ptr.vmem [resolvable:$true] %s153
      %156 = dma.hbm_to_vmem [thread:$0]  %s11, 16, %s154, [#allocation23]
    $region49: #{tpu_custom_call.1} parent=1 // pred_fallthru
      _
    // Predicated region
    $region50: #{tpu_custom_call.1} parent=1 // pred_check
      _
    $region51: #{tpu_custom_call.1} parent=1 // pred_check_branch
      %158 = sbr.rel (0) target = $region53
    $region52: #{tpu_custom_call.1} parent=1 // pred_region
      %159 = dma.done [#allocation5], 32
    $region53: #{tpu_custom_call.1} parent=1 // pred_fallthru
      _
    // Predicated region
    $region54: #{tpu_custom_call.1} parent=1 // pred_check
      _
    $region55: #{tpu_custom_call.1} parent=1 // pred_check_branch
      %161 = sbr.rel (0) target = $region57
    $region56: #{tpu_custom_call.1} parent=1 // pred_region
      %162 = dma.done [#allocation8], 128
    $region57: #{tpu_custom_call.1} parent=1 // pred_fallthru
      _
    // Predicated region
    $region58: #{tpu_custom_call.1} parent=1 // pred_check
      _
    $region59: #{tpu_custom_call.1} parent=1 // pred_check_branch
      %164 = sbr.rel (0) target = $region61
    $region60: #{tpu_custom_call.1} parent=1 // pred_region
      %165 = dma.done [#allocation8], 512
    $region61: #{tpu_custom_call.1} parent=1 // pred_fallthru
      _
    // Predicated region
    $region62: #{tpu_custom_call.1} parent=1 // pred_check
      _
    $region63: #{tpu_custom_call.1} parent=1 // pred_check_branch
      %167 = sbr.rel (0) target = $region65
    $region64: #{tpu_custom_call.1} parent=1 // pred_region
      %168 = dma.done [#allocation11], 16
    $region65: #{tpu_custom_call.1} parent=1 // pred_fallthru
      _
    // Predicated region
    $region66: #{tpu_custom_call.1} parent=1 // pred_check
      _
    $region67: #{tpu_custom_call.1} parent=1 // pred_check_branch
      %170 = sbr.rel (0) target = $region69
    $region68: #{tpu_custom_call.1} parent=1 // pred_region
      %171 = dma.done [#allocation11], 512
    $region69: #{tpu_custom_call.1} parent=1 // pred_fallthru
      _
    // Predicated region
    $region70: #{tpu_custom_call.1} parent=1 // pred_check
      _
    $region71: #{tpu_custom_call.1} parent=1 // pred_check_branch
      %173 = sbr.rel (0) target = $region73
    $region72: #{tpu_custom_call.1} parent=1 // pred_region
      %174 = dma.done [#allocation14], 64
    $region73: #{tpu_custom_call.1} parent=1 // pred_fallthru
      _
    // Predicated region
    $region74: #{tpu_custom_call.1} parent=1 // pred_check
      _
    $region75: #{tpu_custom_call.1} parent=1 // pred_check_branch
      %176 = sbr.rel (0) target = $region77
    $region76: #{tpu_custom_call.1} parent=1 // pred_region
      %177 = dma.done [#allocation14], 512
    $region77: #{tpu_custom_call.1} parent=1 // pred_fallthru
      _
    // Predicated region
    $region78: #{tpu_custom_call.1} parent=1 // pred_check
      _
    $region79: #{tpu_custom_call.1} parent=1 // pred_check_branch
      %179 = sbr.rel (0) target = $region81
    $region80: #{tpu_custom_call.1} parent=1 // pred_region
      %180 = dma.done [#allocation17], 16
    $region81: #{tpu_custom_call.1} parent=1 // pred_fallthru
      _
    // Predicated region
    $region82: #{tpu_custom_call.1} parent=1 // pred_check
      _
    $region83: #{tpu_custom_call.1} parent=1 // pred_check_branch
      %182 = sbr.rel (0) target = $region85
    $region84: #{tpu_custom_call.1} parent=1 // pred_region
      %183 = dma.done [#allocation17], 256
    $region85: #{tpu_custom_call.1} parent=1 // pred_fallthru
      _
    // Predicated region
    $region86: #{tpu_custom_call.1} parent=1 // pred_check
      _
    $region87: #{tpu_custom_call.1} parent=1 // pred_check_branch
      %185 = sbr.rel (0) target = $region89
    $region88: #{tpu_custom_call.1} parent=1 // pred_region
      %186 = dma.done [#allocation20], 64
    $region89: #{tpu_custom_call.1} parent=1 // pred_fallthru
      _
    // Predicated region
    $region90: #{tpu_custom_call.1} parent=1 // pred_check
      _
    $region91: #{tpu_custom_call.1} parent=1 // pred_check_branch
      %188 = sbr.rel (0) target = $region93
    $region92: #{tpu_custom_call.1} parent=1 // pred_region
      %189 = dma.done [#allocation20], 512
    $region93: #{tpu_custom_call.1} parent=1 // pred_fallthru
      _
    // Predicated region
    $region94: #{tpu_custom_call.1} parent=1 // pred_check
      _
    $region95: #{tpu_custom_call.1} parent=1 // pred_check_branch
      %191 = sbr.rel (0) target = $region97
    $region96: #{tpu_custom_call.1} parent=1 // pred_region
      %192 = dma.done [#allocation23], 16
    $region97: #{tpu_custom_call.1} parent=1 // pred_fallthru
      _
    %p193 = scmp.eq.s32.totalorder 0, 0
    // Predicated region
    $region98: #{tpu_custom_call.1} parent=1 // pred_check
      %p194 = pneg %p193
    $region99: #{tpu_custom_call.1} parent=1 // pred_check_branch
      %196 = sbr.rel (%p194) target = $region101
    $region100: #{tpu_custom_call.1} parent=1 // pred_region
      %vm197 = vcmask 0
      %198 = vst.msk [vmem:[#allocation2] sm:$0x1] %vm197, 0.0
      %199 = vst.msk [vmem:[#allocation3] sm:$0x1] %vm197, 0.0
    $region101: #{tpu_custom_call.1} parent=1 // pred_fallthru
      _
    %v200 = vld [vmem:[#allocation4] sm:$0x3]
    %v201 = vld [vmem:[#allocation12] sm:$0xff]
    %v202 = vld [vmem:[#allocation12 + $0x8] sm:$0xff]
    %v203 = vld [vmem:[#allocation12 + $0x10] sm:$0xff]
    %v204 = vld [vmem:[#allocation12 + $0x18] sm:$0xff]
    %vm205 = vcmask 261120
    %v207 = vsel %vm205, %v200, 0
    %209 = vmatprep.subr.mxu0 0.0
    %210 = vmatpush1.msra.mxu0 %v201
    %211 = vmatprep.subr.mxu0 0.0
    %212 = vmatpush1.msra.mxu0 %v202
    %213 = vmatprep.subr.mxu0 0.0
    %214 = vmatpush1.msra.mxu0 %v203
    %215 = vmatprep.subr.mxu0 0.0
    %216 = vmatpush1.msra.mxu0 %v204
    %217 = vmatprep.subr.mxu0 0.0
    %218 = vmatpush1.msra.mxu0 0.0
    %219 = vmatprep.subr.mxu0 0.0
    %220 = vmatpush1.msra.mxu0 0.0
    %221 = vmatprep.subr.mxu0 0.0
    %222 = vmatpush1.msra.mxu0 0.0
    %223 = vmatprep.subr.mxu0 0.0
    %224 = vmatpush1.msra.mxu0 0.0
    %225 = vmatprep.subr.mxu0 0.0
    %226 = vmatpush1.msra.mxu0 0.0
    %227 = vmatprep.subr.mxu0 0.0
    %228 = vmatpush1.msra.mxu0 0.0
    %229 = vmatprep.subr.mxu0 0.0
    %230 = vmatpush1.msra.mxu0 0.0
    %231 = vmatprep.subr.mxu0 0.0
    %232 = vmatpush1.msra.mxu0 0.0
    %233 = vmatprep.subr.mxu0 0.0
    %234 = vmatpush1.msra.mxu0 0.0
    %235 = vmatprep.subr.mxu0 0.0
    %236 = vmatpush1.msra.mxu0 0.0
    %237 = vmatprep.subr.mxu0 0.0
    %238 = vmatpush1.msra.mxu0 0.0
    %239 = vmatprep.subr.mxu0 0.0
    %240 = vmatpush1.msra.mxu0 0.0
    %241 = vmatprep.subr.mxu0 0.0
    %242 = vmatpush1.msra.mxu0 0.0
    %243 = vmatprep.subr.mxu0 0.0
    %244 = vmatpush1.msra.mxu0 0.0
    %245 = vmatprep.subr.mxu0 0.0
    %246 = vmatpush1.msra.mxu0 0.0
    %247 = vmatprep.subr.mxu0 0.0
    %248 = vmatpush1.msra.mxu0 0.0
    %249 = vmatprep.subr.mxu0 0.0
    %250 = vmatpush1.msra.mxu0 0.0
    %251 = vmatprep.subr.mxu0 0.0
    %252 = vmatpush1.msra.mxu0 0.0
    %253 = vmatprep.subr.mxu0 0.0
    %254 = vmatpush1.msra.mxu0 0.0
    %255 = vmatprep.subr.mxu0 0.0
    %256 = vmatpush1.msra.mxu0 0.0
    %257 = vmatprep.subr.mxu0 0.0
    %258 = vmatpush1.msra.mxu0 0.0
    %259 = vmatprep.subr.mxu0 0.0
    %260 = vmatpush1.msra.mxu0 0.0
    %261 = vmatprep.subr.mxu0 0.0
    %262 = vmatpush1.msra.mxu0 0.0
    %263 = vmatprep.subr.mxu0 0.0
    %264 = vmatpush1.msra.mxu0 0.0
    %265 = vmatprep.subr.mxu0 0.0
    %266 = vmatpush1.msra.mxu0 0.0
    %267 = vmatprep.subr.mxu0 0.0
    %268 = vmatpush1.msra.mxu0 0.0
    %269 = vmatprep.subr.mxu0 0.0
    %270 = vmatpush1.msra.mxu0 0.0
    %271 = vmatprep.subr.mxu0 0.0
    %272 = vmatpush1.msra.mxu0 0.0
    %273 = vmatprep.mubr.f32.mxu0 0.0
    %274 = vmatmul.mubr.f32.gmra.mrb[0].mxu0 %v207
    %v275 = vpop.f32.mrb[0].mxu0
    %v276 = vadd.f32 0.0, %v275
    %v277 = vpop.f32.mrb[0].mxu0
    %278 = vdwg.mxu0
    %v279 = vld [vmem:[#allocation9] sm:$0xff]
    %v280 = vld [vmem:[#allocation9 + $0x8] sm:$0xff]
    %v281 = vld [vmem:[#allocation9 + $0x10] sm:$0xff]
    %v282 = vld [vmem:[#allocation9 + $0x18] sm:$0xff]
    %v283 = vld [vmem:[#allocation10] sm:$0x1]
    %v285 = vlaneseq
    %v286 = vshrl.u32 %v285, 7
    %v287 = vsub.s32 0, %v286
    %v288 = vrot.slane %v283, %v287
    %290 = vmatprep.subr.mxu0 0.0
    %291 = vmatpush1.msra.mxu0 %v279
    %292 = vmatprep.subr.mxu0 0.0
    %293 = vmatpush1.msra.mxu0 %v280
    %294 = vmatprep.subr.mxu0 0.0
    %295 = vmatpush1.msra.mxu0 %v281
    %296 = vmatprep.subr.mxu0 0.0
    %297 = vmatpush1.msra.mxu0 %v282
    %298 = vmatprep.subr.mxu0 0.0
    %299 = vmatpush1.msra.mxu0 0.0
    %300 = vmatprep.subr.mxu0 0.0
    %301 = vmatpush1.msra.mxu0 0.0
    %302 = vmatprep.subr.mxu0 0.0
    %303 = vmatpush1.msra.mxu0 0.0
    %304 = vmatprep.subr.mxu0 0.0
    %305 = vmatpush1.msra.mxu0 0.0
    %306 = vmatprep.subr.mxu0 0.0
    %307 = vmatpush1.msra.mxu0 0.0
    %308 = vmatprep.subr.mxu0 0.0
    %309 = vmatpush1.msra.mxu0 0.0
    %310 = vmatprep.subr.mxu0 0.0
    %311 = vmatpush1.msra.mxu0 0.0
    %312 = vmatprep.subr.mxu0 0.0
    %313 = vmatpush1.msra.mxu0 0.0
    %314 = vmatprep.subr.mxu0 0.0
    %315 = vmatpush1.msra.mxu0 0.0
    %316 = vmatprep.subr.mxu0 0.0
    %317 = vmatpush1.msra.mxu0 0.0
    %318 = vmatprep.subr.mxu0 0.0
    %319 = vmatpush1.msra.mxu0 0.0
    %320 = vmatprep.subr.mxu0 0.0
    %321 = vmatpush1.msra.mxu0 0.0
    %322 = vmatprep.subr.mxu0 0.0
    %323 = vmatpush1.msra.mxu0 0.0
    %324 = vmatprep.subr.mxu0 0.0
    %325 = vmatpush1.msra.mxu0 0.0
    %326 = vmatprep.subr.mxu0 0.0
    %327 = vmatpush1.msra.mxu0 0.0
    %328 = vmatprep.subr.mxu0 0.0
    %329 = vmatpush1.msra.mxu0 0.0
    %330 = vmatprep.subr.mxu0 0.0
    %331 = vmatpush1.msra.mxu0 0.0
    %332 = vmatprep.subr.mxu0 0.0
    %333 = vmatpush1.msra.mxu0 0.0
    %334 = vmatprep.subr.mxu0 0.0
    %335 = vmatpush1.msra.mxu0 0.0
    %336 = vmatprep.subr.mxu0 0.0
    %337 = vmatpush1.msra.mxu0 0.0
    %338 = vmatprep.subr.mxu0 0.0
    %339 = vmatpush1.msra.mxu0 0.0
    %340 = vmatprep.subr.mxu0 0.0
    %341 = vmatpush1.msra.mxu0 0.0
    %342 = vmatprep.subr.mxu0 0.0
    %343 = vmatpush1.msra.mxu0 0.0
    %344 = vmatprep.subr.mxu0 0.0
    %345 = vmatpush1.msra.mxu0 0.0
    %346 = vmatprep.subr.mxu0 0.0
    %347 = vmatpush1.msra.mxu0 0.0
    %348 = vmatprep.subr.mxu0 0.0
    %349 = vmatpush1.msra.mxu0 0.0
    %350 = vmatprep.subr.mxu0 0.0
    %351 = vmatpush1.msra.mxu0 0.0
    %352 = vmatprep.subr.mxu0 0.0
    %353 = vmatpush1.msra.mxu0 0.0
    %354 = vmatprep.mubr.f32.mxu0 0.0
    %355 = vmatmul.mubr.f32.gmra.mrb[0].mxu0 %v207
    %v356 = vpop.f32.mrb[0].mxu0
    %v357 = vadd.f32 %v288, %v356
    %v358 = vpop.f32.mrb[0].mxu0
    %359 = vdwg.mxu0
    %vm360 = vcmask 25600
    %v361 = vsel %vm360, %v357, -inf
    %362 = vmax.xlane.f32.xlu0 %v361
    %v363 = vpop.xlane.xlu0 %362
    %v364 = vsub.f32 %v357, %v363
    %v365 = vmul.f32 %v364, 1.442695
    %v366 = vpow.pop %v365
    %v367 = vsel %vm360, %v366, 0.0
    %368 = vadd.xlane.f32.xlu0 %v367
    %v369 = vpop.xlane.xlu0 %368
    %v370 = vrcp.pop %v369
    %v371 = vmul.f32 %v366, %v370
    %v372 = vadd.f32 %v371, 1e-08
    %v373 = vlog2.pop %v372
    %v374 = vmul.f32 %v373, 0.6931472
    %v375 = vmul.f32 %v371, %v374
    %v376 = vsel %vm360, %v375, 0.0
    %377 = vadd.xlane.f32.xlu0 %v376
    %v378 = vpop.xlane.xlu0 %377
    %v379 = vsub.f32 0.0, %v378
    %v380 = vld [vmem:[#allocation15] sm:$0xff]
    %v381 = vld [vmem:[#allocation15 + $0x8] sm:$0xff]
    %v382 = vld [vmem:[#allocation15 + $0x10] sm:$0xff]
    %v383 = vld [vmem:[#allocation15 + $0x18] sm:$0xff]
    %v384 = vld [vmem:[#allocation18] sm:$0xff]
    %v385 = vld [vmem:[#allocation18 + $0x8] sm:$0xff]
    %v386 = vld [vmem:[#allocation21] sm:$0xff]
    %v387 = vld [vmem:[#allocation21 + $0x8] sm:$0xff]
    %v388 = vld [vmem:[#allocation21 + $0x10] sm:$0xff]
    %v389 = vld [vmem:[#allocation21 + $0x18] sm:$0xff]
    %v390 = vld [vmem:[#allocation16] sm:$0x1]
    %v391 = vld [vmem:[#allocation22] sm:$0x1]
    %v392 = vld [vmem:[#allocation13] sm:$0x1]
    %v393 = vlaneseq
    %v394 = vshrl.u32 %v393, 7
    %v395 = vsub.s32 0, %v394
    %v396 = vrot.slane %v392, %v395
    %v397 = vadd.f32 %v276, %v396
    %v398 = vmax.f32 %v397, 0.0
    %v400 = vlaneseq
    %v401 = vshrl.u32 %v400, 7
    %v402 = vsub.s32 0, %v401
    %v403 = vrot.slane %v390, %v402
    %v406 = vsel %vm205, %v398, 0
    %408 = vmatprep.subr.mxu0 0.0
    %409 = vmatpush1.msra.mxu0 %v380
    %410 = vmatprep.subr.mxu0 0.0
    %411 = vmatpush1.msra.mxu0 %v381
    %412 = vmatprep.subr.mxu0 0.0
    %413 = vmatpush1.msra.mxu0 %v382
    %414 = vmatprep.subr.mxu0 0.0
    %415 = vmatpush1.msra.mxu0 %v383
    %416 = vmatprep.subr.mxu0 0.0
    %417 = vmatpush1.msra.mxu0 0.0
    %418 = vmatprep.subr.mxu0 0.0
    %419 = vmatpush1.msra.mxu0 0.0
    %420 = vmatprep.subr.mxu0 0.0
    %421 = vmatpush1.msra.mxu0 0.0
    %422 = vmatprep.subr.mxu0 0.0
    %423 = vmatpush1.msra.mxu0 0.0
    %424 = vmatprep.subr.mxu0 0.0
    %425 = vmatpush1.msra.mxu0 0.0
    %426 = vmatprep.subr.mxu0 0.0
    %427 = vmatpush1.msra.mxu0 0.0
    %428 = vmatprep.subr.mxu0 0.0
    %429 = vmatpush1.msra.mxu0 0.0
    %430 = vmatprep.subr.mxu0 0.0
    %431 = vmatpush1.msra.mxu0 0.0
    %432 = vmatprep.subr.mxu0 0.0
    %433 = vmatpush1.msra.mxu0 0.0
    %434 = vmatprep.subr.mxu0 0.0
    %435 = vmatpush1.msra.mxu0 0.0
    %436 = vmatprep.subr.mxu0 0.0
    %437 = vmatpush1.msra.mxu0 0.0
    %438 = vmatprep.subr.mxu0 0.0
    %439 = vmatpush1.msra.mxu0 0.0
    %440 = vmatprep.subr.mxu0 0.0
    %441 = vmatpush1.msra.mxu0 0.0
    %442 = vmatprep.subr.mxu0 0.0
    %443 = vmatpush1.msra.mxu0 0.0
    %444 = vmatprep.subr.mxu0 0.0
    %445 = vmatpush1.msra.mxu0 0.0
    %446 = vmatprep.subr.mxu0 0.0
    %447 = vmatpush1.msra.mxu0 0.0
    %448 = vmatprep.subr.mxu0 0.0
    %449 = vmatpush1.msra.mxu0 0.0
    %450 = vmatprep.subr.mxu0 0.0
    %451 = vmatpush1.msra.mxu0 0.0
    %452 = vmatprep.subr.mxu0 0.0
    %453 = vmatpush1.msra.mxu0 0.0
    %454 = vmatprep.subr.mxu0 0.0
    %455 = vmatpush1.msra.mxu0 0.0
    %456 = vmatprep.subr.mxu0 0.0
    %457 = vmatpush1.msra.mxu0 0.0
    %458 = vmatprep.subr.mxu0 0.0
    %459 = vmatpush1.msra.mxu0 0.0
    %460 = vmatprep.subr.mxu0 0.0
    %461 = vmatpush1.msra.mxu0 0.0
    %462 = vmatprep.subr.mxu0 0.0
    %463 = vmatpush1.msra.mxu0 0.0
    %464 = vmatprep.subr.mxu0 0.0
    %465 = vmatpush1.msra.mxu0 0.0
    %466 = vmatprep.subr.mxu0 0.0
    %467 = vmatpush1.msra.mxu0 0.0
    %468 = vmatprep.subr.mxu0 0.0
    %469 = vmatpush1.msra.mxu0 0.0
    %470 = vmatprep.subr.mxu0 0.0
    %471 = vmatpush1.msra.mxu0 0.0
    %472 = vmatprep.mubr.f32.mxu0 0.0
    %473 = vmatmul.mubr.f32.gmra.mrb[0].mxu0 %v406
    %v474 = vpop.f32.mrb[0].mxu0
    %v475 = vadd.f32 %v403, %v474
    %v476 = vpop.f32.mrb[0].mxu0
    %477 = vdwg.mxu0
    %v478 = vld [vmem:[#allocation7] sm:$0x1]
    %v479 = vld [vmem:[#allocation7 + $0x4] sm:$0x1]
    %v480 = vmul.f32 %v475, 0.5
    %v481 = vmul.f32 %v480, 1.442695
    %v482 = vpow.pop %v481
    %v485 = vrot.slane %v479, 7
    %vm486 = vcmask 1041409
    %v487 = vsel %vm486, %v485, %v478
    %488 = vrot.lane.b32.xlu0 %v487, 16
    %v489 = vpop.permute.xlu0 %488
    %v491 = vmul.f32 %v482, %v489
    %493 = vrot.lane.b32.xlu0 %v491, 112
    %v494 = vpop.permute.xlu0 %493
    %v496 = vadd.f32 %v475, %v494
    %v497 = vmul.f32 %v496, %v496
    %499 = vrot.lane.b32.xlu0 %v475, 112
    %v500 = vpop.permute.xlu0 %499
    %v502 = vsub.f32 %v497, %v500
    %v503 = vmul.f32 %v478, %v478
    %v504 = vmul.f32 %v479, %v479
    %v507 = vrot.slane %v504, 7
    %v508 = vsel %vm486, %v507, %v503
    %v510 = vsub.f32 %v502, %v508
    %v511 = vmul.f32 %v510, 0.5
    %vm512 = vcmask 123904
    %v513 = vsel %vm512, %v511, 0.0
    %514 = vadd.xlane.f32.xlu0 %v513
    %v515 = vpop.xlane.xlu0 %514
    %v516 = vld [vmem:[#allocation19] sm:$0x1]
    %v517 = vlaneseq
    %v518 = vshrl.u32 %v517, 7
    %v519 = vsub.s32 0, %v518
    %v520 = vrot.slane %v516, %v519
    %vm521 = vcmask 130048
    %v523 = vsel %vm521, %v496, 0
    %525 = vmatprep.subr.mxu0 0.0
    %526 = vmatpush1.msra.mxu0 %v384
    %527 = vmatprep.subr.mxu0 0.0
    %528 = vmatpush1.msra.mxu0 %v385
    %529 = vmatprep.subr.mxu0 0.0
    %530 = vmatpush1.msra.mxu0 0.0
    %531 = vmatprep.subr.mxu0 0.0
    %532 = vmatpush1.msra.mxu0 0.0
    %533 = vmatprep.subr.mxu0 0.0
    %534 = vmatpush1.msra.mxu0 0.0
    %535 = vmatprep.subr.mxu0 0.0
    %536 = vmatpush1.msra.mxu0 0.0
    %537 = vmatprep.subr.mxu0 0.0
    %538 = vmatpush1.msra.mxu0 0.0
    %539 = vmatprep.subr.mxu0 0.0
    %540 = vmatpush1.msra.mxu0 0.0
    %541 = vmatprep.subr.mxu0 0.0
    %542 = vmatpush1.msra.mxu0 0.0
    %543 = vmatprep.subr.mxu0 0.0
    %544 = vmatpush1.msra.mxu0 0.0
    %545 = vmatprep.subr.mxu0 0.0
    %546 = vmatpush1.msra.mxu0 0.0
    %547 = vmatprep.subr.mxu0 0.0
    %548 = vmatpush1.msra.mxu0 0.0
    %549 = vmatprep.subr.mxu0 0.0
    %550 = vmatpush1.msra.mxu0 0.0
    %551 = vmatprep.subr.mxu0 0.0
    %552 = vmatpush1.msra.mxu0 0.0
    %553 = vmatprep.subr.mxu0 0.0
    %554 = vmatpush1.msra.mxu0 0.0
    %555 = vmatprep.subr.mxu0 0.0
    %556 = vmatpush1.msra.mxu0 0.0
    %557 = vmatprep.subr.mxu0 0.0
    %558 = vmatpush1.msra.mxu0 0.0
    %559 = vmatprep.subr.mxu0 0.0
    %560 = vmatpush1.msra.mxu0 0.0
    %561 = vmatprep.subr.mxu0 0.0
    %562 = vmatpush1.msra.mxu0 0.0
    %563 = vmatprep.subr.mxu0 0.0
    %564 = vmatpush1.msra.mxu0 0.0
    %565 = vmatprep.subr.mxu0 0.0
    %566 = vmatpush1.msra.mxu0 0.0
    %567 = vmatprep.subr.mxu0 0.0
    %568 = vmatpush1.msra.mxu0 0.0
    %569 = vmatprep.subr.mxu0 0.0
    %570 = vmatpush1.msra.mxu0 0.0
    %571 = vmatprep.subr.mxu0 0.0
    %572 = vmatpush1.msra.mxu0 0.0
    %573 = vmatprep.subr.mxu0 0.0
    %574 = vmatpush1.msra.mxu0 0.0
    %575 = vmatprep.subr.mxu0 0.0
    %576 = vmatpush1.msra.mxu0 0.0
    %577 = vmatprep.subr.mxu0 0.0
    %578 = vmatpush1.msra.mxu0 0.0
    %579 = vmatprep.subr.mxu0 0.0
    %580 = vmatpush1.msra.mxu0 0.0
    %581 = vmatprep.subr.mxu0 0.0
    %582 = vmatpush1.msra.mxu0 0.0
    %583 = vmatprep.subr.mxu0 0.0
    %584 = vmatpush1.msra.mxu0 0.0
    %585 = vmatprep.subr.mxu0 0.0
    %586 = vmatpush1.msra.mxu0 0.0
    %587 = vmatprep.subr.mxu0 0.0
    %588 = vmatpush1.msra.mxu0 0.0
    %589 = vmatprep.mubr.f32.mxu0 0.0
    %590 = vmatmul.mubr.f32.gmra.mrb[0].mxu0 %v523
    %v591 = vpop.f32.mrb[0].mxu0
    %v592 = vadd.f32 %v520, %v591
    %v593 = vpop.f32.mrb[0].mxu0
    %594 = vdwg.mxu0
    %v595 = vmax.f32 %v592, 0.0
    %v597 = vlaneseq
    %v598 = vshrl.u32 %v597, 7
    %v599 = vsub.s32 0, %v598
    %v600 = vrot.slane %v391, %v599
    %v603 = vsel %vm205, %v595, 0
    %605 = vmatprep.subr.mxu0 0.0
    %606 = vmatpush1.msra.mxu0 %v386
    %607 = vmatprep.subr.mxu0 0.0
    %608 = vmatpush1.msra.mxu0 %v387
    %609 = vmatprep.subr.mxu0 0.0
    %610 = vmatpush1.msra.mxu0 %v388
    %611 = vmatprep.subr.mxu0 0.0
    %612 = vmatpush1.msra.mxu0 %v389
    %613 = vmatprep.subr.mxu0 0.0
    %614 = vmatpush1.msra.mxu0 0.0
    %615 = vmatprep.subr.mxu0 0.0
    %616 = vmatpush1.msra.mxu0 0.0
    %617 = vmatprep.subr.mxu0 0.0
    %618 = vmatpush1.msra.mxu0 0.0
    %619 = vmatprep.subr.mxu0 0.0
    %620 = vmatpush1.msra.mxu0 0.0
    %621 = vmatprep.subr.mxu0 0.0
    %622 = vmatpush1.msra.mxu0 0.0
    %623 = vmatprep.subr.mxu0 0.0
    %624 = vmatpush1.msra.mxu0 0.0
    %625 = vmatprep.subr.mxu0 0.0
    %626 = vmatpush1.msra.mxu0 0.0
    %627 = vmatprep.subr.mxu0 0.0
    %628 = vmatpush1.msra.mxu0 0.0
    %629 = vmatprep.subr.mxu0 0.0
    %630 = vmatpush1.msra.mxu0 0.0
    %631 = vmatprep.subr.mxu0 0.0
    %632 = vmatpush1.msra.mxu0 0.0
    %633 = vmatprep.subr.mxu0 0.0
    %634 = vmatpush1.msra.mxu0 0.0
    %635 = vmatprep.subr.mxu0 0.0
    %636 = vmatpush1.msra.mxu0 0.0
    %637 = vmatprep.subr.mxu0 0.0
    %638 = vmatpush1.msra.mxu0 0.0
    %639 = vmatprep.subr.mxu0 0.0
    %640 = vmatpush1.msra.mxu0 0.0
    %641 = vmatprep.subr.mxu0 0.0
    %642 = vmatpush1.msra.mxu0 0.0
    %643 = vmatprep.subr.mxu0 0.0
    %644 = vmatpush1.msra.mxu0 0.0
    %645 = vmatprep.subr.mxu0 0.0
    %646 = vmatpush1.msra.mxu0 0.0
    %647 = vmatprep.subr.mxu0 0.0
    %648 = vmatpush1.msra.mxu0 0.0
    %649 = vmatprep.subr.mxu0 0.0
    %650 = vmatpush1.msra.mxu0 0.0
    %651 = vmatprep.subr.mxu0 0.0
    %652 = vmatpush1.msra.mxu0 0.0
    %653 = vmatprep.subr.mxu0 0.0
    %654 = vmatpush1.msra.mxu0 0.0
    %655 = vmatprep.subr.mxu0 0.0
    %656 = vmatpush1.msra.mxu0 0.0
    %657 = vmatprep.subr.mxu0 0.0
    %658 = vmatpush1.msra.mxu0 0.0
    %659 = vmatprep.subr.mxu0 0.0
    %660 = vmatpush1.msra.mxu0 0.0
    %661 = vmatprep.subr.mxu0 0.0
    %662 = vmatpush1.msra.mxu0 0.0
    %663 = vmatprep.subr.mxu0 0.0
    %664 = vmatpush1.msra.mxu0 0.0
    %665 = vmatprep.subr.mxu0 0.0
    %666 = vmatpush1.msra.mxu0 0.0
    %667 = vmatprep.subr.mxu0 0.0
    %668 = vmatpush1.msra.mxu0 0.0
    %669 = vmatprep.mubr.f32.mxu0 0.0
    %670 = vmatmul.mubr.f32.gmra.mrb[0].mxu0 %v603
    %v671 = vpop.f32.mrb[0].mxu0
    %v672 = vadd.f32 %v600, %v671
    %v673 = vpop.f32.mrb[0].mxu0
    %674 = vdwg.mxu0
    %v675 = vmax.f32 %v672, 0.0
    %v676 = vmul.f32 %v200, %v672
    %v677 = vsub.f32 %v675, %v676
    %v678 = vand.u32 2147483647, %v672
    %v679 = vsub.f32 0.0, %v678
    %v680 = vmul.f32 %v679, 1.442695
    %v681 = vpow.pop %v680
    %v682 = vadd.f32 %v681, 1.0
    %v683 = vlog2.pop %v682
    %v684 = vmul.f32 %v683, 0.6931472
    %v685 = vmul.f32 -0.5, %v681
    %v686 = vadd.f32 %v685, 1.0
    %v687 = vmul.f32 %v686, %v681
    %v688 = vand.u32 2147483647, %v681
    %vm689 = vcmp.lt.f32.partialorder %v688, 0.0004427343
    %v690 = vsel %vm689, %v687, %v684
    %v691 = vadd.f32 %v677, %v690
    %vm692 = vcmask 254976
    %v693 = vsel %vm692, %v691, 0.0
    %694 = vadd.xlane.f32.xlu0 %v693
    %v695 = vpop.xlane.xlu0 %694
    %vm696 = vcmask 1041408
    %v697 = vsel %vm696, %v695, 0.0
    %v698 = vrot.slane %v697, 4
    %v699 = vadd.f32 %v697, %v698
    %v700 = vrot.slane %v699, 2
    %v701 = vadd.f32 %v699, %v700
    %v702 = vrot.slane %v701, 1
    %v703 = vadd.f32 %v701, %v702
    %v704 = vadd.f32 %v703, 0.0
    %v705 = vmul.f32 %v371, %v515
    %v706 = vadd.f32 %v705, 0.0
    %v707 = vld [vmem:[#allocation13 + $0x1] sm:$0x1]
    %v708 = vlaneseq
    %v709 = vshrl.u32 %v708, 7
    %v710 = vsub.s32 0, %v709
    %v711 = vrot.slane %v707, %v710
    %v712 = vadd.f32 %v276, %v711
    %v713 = vmax.f32 %v712, 0.0
    %v715 = vsel %vm205, %v713, 0
    %717 = vmatprep.subr.mxu0 0.0
    %718 = vmatpush1.msra.mxu0 %v380
    %719 = vmatprep.subr.mxu0 0.0
    %720 = vmatpush1.msra.mxu0 %v381
    %721 = vmatprep.subr.mxu0 0.0
    %722 = vmatpush1.msra.mxu0 %v382
    %723 = vmatprep.subr.mxu0 0.0
    %724 = vmatpush1.msra.mxu0 %v383
    %725 = vmatprep.subr.mxu0 0.0
    %726 = vmatpush1.msra.mxu0 0.0
    %727 = vmatprep.subr.mxu0 0.0
    %728 = vmatpush1.msra.mxu0 0.0
    %729 = vmatprep.subr.mxu0 0.0
    %730 = vmatpush1.msra.mxu0 0.0
    %731 = vmatprep.subr.mxu0 0.0
    %732 = vmatpush1.msra.mxu0 0.0
    %733 = vmatprep.subr.mxu0 0.0
    %734 = vmatpush1.msra.mxu0 0.0
    %735 = vmatprep.subr.mxu0 0.0
    %736 = vmatpush1.msra.mxu0 0.0
    %737 = vmatprep.subr.mxu0 0.0
    %738 = vmatpush1.msra.mxu0 0.0
    %739 = vmatprep.subr.mxu0 0.0
    %740 = vmatpush1.msra.mxu0 0.0
    %741 = vmatprep.subr.mxu0 0.0
    %742 = vmatpush1.msra.mxu0 0.0
    %743 = vmatprep.subr.mxu0 0.0
    %744 = vmatpush1.msra.mxu0 0.0
    %745 = vmatprep.subr.mxu0 0.0
    %746 = vmatpush1.msra.mxu0 0.0
    %747 = vmatprep.subr.mxu0 0.0
    %748 = vmatpush1.msra.mxu0 0.0
    %749 = vmatprep.subr.mxu0 0.0
    %750 = vmatpush1.msra.mxu0 0.0
    %751 = vmatprep.subr.mxu0 0.0
    %752 = vmatpush1.msra.mxu0 0.0
    %753 = vmatprep.subr.mxu0 0.0
    %754 = vmatpush1.msra.mxu0 0.0
    %755 = vmatprep.subr.mxu0 0.0
    %756 = vmatpush1.msra.mxu0 0.0
    %757 = vmatprep.subr.mxu0 0.0
    %758 = vmatpush1.msra.mxu0 0.0
    %759 = vmatprep.subr.mxu0 0.0
    %760 = vmatpush1.msra.mxu0 0.0
    %761 = vmatprep.subr.mxu0 0.0
    %762 = vmatpush1.msra.mxu0 0.0
    %763 = vmatprep.subr.mxu0 0.0
    %764 = vmatpush1.msra.mxu0 0.0
    %765 = vmatprep.subr.mxu0 0.0
    %766 = vmatpush1.msra.mxu0 0.0
    %767 = vmatprep.subr.mxu0 0.0
    %768 = vmatpush1.msra.mxu0 0.0
    %769 = vmatprep.subr.mxu0 0.0
    %770 = vmatpush1.msra.mxu0 0.0
    %771 = vmatprep.subr.mxu0 0.0
    %772 = vmatpush1.msra.mxu0 0.0
    %773 = vmatprep.subr.mxu0 0.0
    %774 = vmatpush1.msra.mxu0 0.0
    %775 = vmatprep.subr.mxu0 0.0
    %776 = vmatpush1.msra.mxu0 0.0
    %777 = vmatprep.subr.mxu0 0.0
    %778 = vmatpush1.msra.mxu0 0.0
    %779 = vmatprep.subr.mxu0 0.0
    %780 = vmatpush1.msra.mxu0 0.0
    %781 = vmatprep.mubr.f32.mxu0 0.0
    %782 = vmatmul.mubr.f32.gmra.mrb[0].mxu0 %v715
    %v783 = vpop.f32.mrb[0].mxu0
    %v784 = vadd.f32 %v403, %v783
    %v785 = vpop.f32.mrb[0].mxu0
    %786 = vdwg.mxu0
    %v787 = vld [vmem:[#allocation7 + $0x1] sm:$0x1]
    %v788 = vld [vmem:[#allocation7 + $0x5] sm:$0x1]
    %v789 = vmul.f32 %v784, 0.5
    %v790 = vmul.f32 %v789, 1.442695
    %v791 = vpow.pop %v790
    %v794 = vrot.slane %v788, 7
    %v795 = vsel %vm486, %v794, %v787
    %796 = vrot.lane.b32.xlu0 %v795, 16
    %v797 = vpop.permute.xlu0 %796
    %v799 = vmul.f32 %v791, %v797
    %801 = vrot.lane.b32.xlu0 %v799, 112
    %v802 = vpop.permute.xlu0 %801
    %v804 = vadd.f32 %v784, %v802
    %v805 = vmul.f32 %v804, %v804
    %807 = vrot.lane.b32.xlu0 %v784, 112
    %v808 = vpop.permute.xlu0 %807
    %v810 = vsub.f32 %v805, %v808
    %v811 = vmul.f32 %v787, %v787
    %v812 = vmul.f32 %v788, %v788
    %v815 = vrot.slane %v812, 7
    %v816 = vsel %vm486, %v815, %v811
    %v818 = vsub.f32 %v810, %v816
    %v819 = vmul.f32 %v818, 0.5
    %v820 = vsel %vm512, %v819, 0.0
    %821 = vadd.xlane.f32.xlu0 %v820
    %v822 = vpop.xlane.xlu0 %821
    %v823 = vld [vmem:[#allocation19 + $0x1] sm:$0x1]
    %v824 = vlaneseq
    %v825 = vshrl.u32 %v824, 7
    %v826 = vsub.s32 0, %v825
    %v827 = vrot.slane %v823, %v826
    %v829 = vsel %vm521, %v804, 0
    %831 = vmatprep.subr.mxu0 0.0
    %832 = vmatpush1.msra.mxu0 %v384
    %833 = vmatprep.subr.mxu0 0.0
    %834 = vmatpush1.msra.mxu0 %v385
    %835 = vmatprep.subr.mxu0 0.0
    %836 = vmatpush1.msra.mxu0 0.0
    %837 = vmatprep.subr.mxu0 0.0
    %838 = vmatpush1.msra.mxu0 0.0
    %839 = vmatprep.subr.mxu0 0.0
    %840 = vmatpush1.msra.mxu0 0.0
    %841 = vmatprep.subr.mxu0 0.0
    %842 = vmatpush1.msra.mxu0 0.0
    %843 = vmatprep.subr.mxu0 0.0
    %844 = vmatpush1.msra.mxu0 0.0
    %845 = vmatprep.subr.mxu0 0.0
    %846 = vmatpush1.msra.mxu0 0.0
    %847 = vmatprep.subr.mxu0 0.0
    %848 = vmatpush1.msra.mxu0 0.0
    %849 = vmatprep.subr.mxu0 0.0
    %850 = vmatpush1.msra.mxu0 0.0
    %851 = vmatprep.subr.mxu0 0.0
    %852 = vmatpush1.msra.mxu0 0.0
    %853 = vmatprep.subr.mxu0 0.0
    %854 = vmatpush1.msra.mxu0 0.0
    %855 = vmatprep.subr.mxu0 0.0
    %856 = vmatpush1.msra.mxu0 0.0
    %857 = vmatprep.subr.mxu0 0.0
    %858 = vmatpush1.msra.mxu0 0.0
    %859 = vmatprep.subr.mxu0 0.0
    %860 = vmatpush1.msra.mxu0 0.0
    %861 = vmatprep.subr.mxu0 0.0
    %862 = vmatpush1.msra.mxu0 0.0
    %863 = vmatprep.subr.mxu0 0.0
    %864 = vmatpush1.msra.mxu0 0.0
    %865 = vmatprep.subr.mxu0 0.0
    %866 = vmatpush1.msra.mxu0 0.0
    %867 = vmatprep.subr.mxu0 0.0
    %868 = vmatpush1.msra.mxu0 0.0
    %869 = vmatprep.subr.mxu0 0.0
    %870 = vmatpush1.msra.mxu0 0.0
    %871 = vmatprep.subr.mxu0 0.0
    %872 = vmatpush1.msra.mxu0 0.0
    %873 = vmatprep.subr.mxu0 0.0
    %874 = vmatpush1.msra.mxu0 0.0
    %875 = vmatprep.subr.mxu0 0.0
    %876 = vmatpush1.msra.mxu0 0.0
    %877 = vmatprep.subr.mxu0 0.0
    %878 = vmatpush1.msra.mxu0 0.0
    %879 = vmatprep.subr.mxu0 0.0
    %880 = vmatpush1.msra.mxu0 0.0
    %881 = vmatprep.subr.mxu0 0.0
    %882 = vmatpush1.msra.mxu0 0.0
    %883 = vmatprep.subr.mxu0 0.0
    %884 = vmatpush1.msra.mxu0 0.0
    %885 = vmatprep.subr.mxu0 0.0
    %886 = vmatpush1.msra.mxu0 0.0
    %887 = vmatprep.subr.mxu0 0.0
    %888 = vmatpush1.msra.mxu0 0.0
    %889 = vmatprep.subr.mxu0 0.0
    %890 = vmatpush1.msra.mxu0 0.0
    %891 = vmatprep.subr.mxu0 0.0
    %892 = vmatpush1.msra.mxu0 0.0
    %893 = vmatprep.subr.mxu0 0.0
    %894 = vmatpush1.msra.mxu0 0.0
    %895 = vmatprep.mubr.f32.mxu0 0.0
    %896 = vmatmul.mubr.f32.gmra.mrb[0].mxu0 %v829
    %v897 = vpop.f32.mrb[0].mxu0
    %v898 = vadd.f32 %v827, %v897
    %v899 = vpop.f32.mrb[0].mxu0
    %900 = vdwg.mxu0
    %v901 = vmax.f32 %v898, 0.0
    %v903 = vsel %vm205, %v901, 0
    %905 = vmatprep.subr.mxu0 0.0
    %906 = vmatpush1.msra.mxu0 %v386
    %907 = vmatprep.subr.mxu0 0.0
    %908 = vmatpush1.msra.mxu0 %v387
    %909 = vmatprep.subr.mxu0 0.0
    %910 = vmatpush1.msra.mxu0 %v388
    %911 = vmatprep.subr.mxu0 0.0
    %912 = vmatpush1.msra.mxu0 %v389
    %913 = vmatprep.subr.mxu0 0.0
    %914 = vmatpush1.msra.mxu0 0.0
    %915 = vmatprep.subr.mxu0 0.0
    %916 = vmatpush1.msra.mxu0 0.0
    %917 = vmatprep.subr.mxu0 0.0
    %918 = vmatpush1.msra.mxu0 0.0
    %919 = vmatprep.subr.mxu0 0.0
    %920 = vmatpush1.msra.mxu0 0.0
    %921 = vmatprep.subr.mxu0 0.0
    %922 = vmatpush1.msra.mxu0 0.0
    %923 = vmatprep.subr.mxu0 0.0
    %924 = vmatpush1.msra.mxu0 0.0
    %925 = vmatprep.subr.mxu0 0.0
    %926 = vmatpush1.msra.mxu0 0.0
    %927 = vmatprep.subr.mxu0 0.0
    %928 = vmatpush1.msra.mxu0 0.0
    %929 = vmatprep.subr.mxu0 0.0
    %930 = vmatpush1.msra.mxu0 0.0
    %931 = vmatprep.subr.mxu0 0.0
    %932 = vmatpush1.msra.mxu0 0.0
    %933 = vmatprep.subr.mxu0 0.0
    %934 = vmatpush1.msra.mxu0 0.0
    %935 = vmatprep.subr.mxu0 0.0
    %936 = vmatpush1.msra.mxu0 0.0
    %937 = vmatprep.subr.mxu0 0.0
    %938 = vmatpush1.msra.mxu0 0.0
    %939 = vmatprep.subr.mxu0 0.0
    %940 = vmatpush1.msra.mxu0 0.0
    %941 = vmatprep.subr.mxu0 0.0
    %942 = vmatpush1.msra.mxu0 0.0
    %943 = vmatprep.subr.mxu0 0.0
    %944 = vmatpush1.msra.mxu0 0.0
    %945 = vmatprep.subr.mxu0 0.0
    %946 = vmatpush1.msra.mxu0 0.0
    %947 = vmatprep.subr.mxu0 0.0
    %948 = vmatpush1.msra.mxu0 0.0
    %949 = vmatprep.subr.mxu0 0.0
    %950 = vmatpush1.msra.mxu0 0.0
    %951 = vmatprep.subr.mxu0 0.0
    %952 = vmatpush1.msra.mxu0 0.0
    %953 = vmatprep.subr.mxu0 0.0
    %954 = vmatpush1.msra.mxu0 0.0
    %955 = vmatprep.subr.mxu0 0.0
    %956 = vmatpush1.msra.mxu0 0.0
    %957 = vmatprep.subr.mxu0 0.0
    %958 = vmatpush1.msra.mxu0 0.0
    %959 = vmatprep.subr.mxu0 0.0
    %960 = vmatpush1.msra.mxu0 0.0
    %961 = vmatprep.subr.mxu0 0.0
    %962 = vmatpush1.msra.mxu0 0.0
    %963 = vmatprep.subr.mxu0 0.0
    %964 = vmatpush1.msra.mxu0 0.0
    %965 = vmatprep.subr.mxu0 0.0
    %966 = vmatpush1.msra.mxu0 0.0
    %967 = vmatprep.subr.mxu0 0.0
    %968 = vmatpush1.msra.mxu0 0.0
    %969 = vmatprep.mubr.f32.mxu0 0.0
    %970 = vmatmul.mubr.f32.gmra.mrb[0].mxu0 %v903
    %v971 = vpop.f32.mrb[0].mxu0
    %v972 = vadd.f32 %v600, %v971
    %v973 = vpop.f32.mrb[0].mxu0
    %974 = vdwg.mxu0
    %v975 = vmax.f32 %v972, 0.0
    %v976 = vmul.f32 %v200, %v972
    %v977 = vsub.f32 %v975, %v976
    %v978 = vand.u32 2147483647, %v972
    %v979 = vsub.f32 0.0, %v978
    %v980 = vmul.f32 %v979, 1.442695
    %v981 = vpow.pop %v980
    %v982 = vadd.f32 %v981, 1.0
    %v983 = vlog2.pop %v982
    %v984 = vmul.f32 %v983, 0.6931472
    %v985 = vmul.f32 -0.5, %v981
    %v986 = vadd.f32 %v985, 1.0
    %v987 = vmul.f32 %v986, %v981
    %v988 = vand.u32 2147483647, %v981
    %vm989 = vcmp.lt.f32.partialorder %v988, 0.0004427343
    %v990 = vsel %vm989, %v987, %v984
    %v991 = vadd.f32 %v977, %v990
    %v992 = vsel %vm692, %v991, 0.0
    %993 = vadd.xlane.f32.xlu0 %v992
    %v994 = vpop.xlane.xlu0 %993
    %v995 = vsel %vm696, %v994, 0.0
    %v996 = vrot.slane %v995, 4
    %v997 = vadd.f32 %v995, %v996
    %v998 = vrot.slane %v997, 2
    %v999 = vadd.f32 %v997, %v998
    %v1000 = vrot.slane %v999, 1
    %v1001 = vadd.f32 %v999, %v1000
    %v1002 = vadd.f32 %v704, %v1001
    %v1003 = vmul.f32 %v371, %v822
    %1005 = vrot.lane.b32.xlu0 %v1003, 127
    %v1006 = vpop.permute.xlu0 %1005
    %v1008 = vadd.f32 %v706, %v1006
    %v1009 = vld [vmem:[#allocation13 + $0x2] sm:$0x1]
    %v1010 = vlaneseq
    %v1011 = vshrl.u32 %v1010, 7
    %v1012 = vsub.s32 0, %v1011
    %v1013 = vrot.slane %v1009, %v1012
    %v1014 = vadd.f32 %v276, %v1013
    %v1015 = vmax.f32 %v1014, 0.0
    %v1017 = vsel %vm205, %v1015, 0
    %1019 = vmatprep.subr.mxu0 0.0
    %1020 = vmatpush1.msra.mxu0 %v380
    %1021 = vmatprep.subr.mxu0 0.0
    %1022 = vmatpush1.msra.mxu0 %v381
    %1023 = vmatprep.subr.mxu0 0.0
    %1024 = vmatpush1.msra.mxu0 %v382
    %1025 = vmatprep.subr.mxu0 0.0
    %1026 = vmatpush1.msra.mxu0 %v383
    %1027 = vmatprep.subr.mxu0 0.0
    %1028 = vmatpush1.msra.mxu0 0.0
    %1029 = vmatprep.subr.mxu0 0.0
    %1030 = vmatpush1.msra.mxu0 0.0
    %1031 = vmatprep.subr.mxu0 0.0
    %1032 = vmatpush1.msra.mxu0 0.0
    %1033 = vmatprep.subr.mxu0 0.0
    %1034 = vmatpush1.msra.mxu0 0.0
    %1035 = vmatprep.subr.mxu0 0.0
    %1036 = vmatpush1.msra.mxu0 0.0
    %1037 = vmatprep.subr.mxu0 0.0
    %1038 = vmatpush1.msra.mxu0 0.0
    %1039 = vmatprep.subr.mxu0 0.0
    %1040 = vmatpush1.msra.mxu0 0.0
    %1041 = vmatprep.subr.mxu0 0.0
    %1042 = vmatpush1.msra.mxu0 0.0
    %1043 = vmatprep.subr.mxu0 0.0
    %1044 = vmatpush1.msra.mxu0 0.0
    %1045 = vmatprep.subr.mxu0 0.0
    %1046 = vmatpush1.msra.mxu0 0.0
    %1047 = vmatprep.subr.mxu0 0.0
    %1048 = vmatpush1.msra.mxu0 0.0
    %1049 = vmatprep.subr.mxu0 0.0
    %1050 = vmatpush1.msra.mxu0 0.0
    %1051 = vmatprep.subr.mxu0 0.0
    %1052 = vmatpush1.msra.mxu0 0.0
    %1053 = vmatprep.subr.mxu0 0.0
    %1054 = vmatpush1.msra.mxu0 0.0
    %1055 = vmatprep.subr.mxu0 0.0
    %1056 = vmatpush1.msra.mxu0 0.0
    %1057 = vmatprep.subr.mxu0 0.0
    %1058 = vmatpush1.msra.mxu0 0.0
    %1059 = vmatprep.subr.mxu0 0.0
    %1060 = vmatpush1.msra.mxu0 0.0
    %1061 = vmatprep.subr.mxu0 0.0
    %1062 = vmatpush1.msra.mxu0 0.0
    %1063 = vmatprep.subr.mxu0 0.0
    %1064 = vmatpush1.msra.mxu0 0.0
    %1065 = vmatprep.subr.mxu0 0.0
    %1066 = vmatpush1.msra.mxu0 0.0
    %1067 = vmatprep.subr.mxu0 0.0
    %1068 = vmatpush1.msra.mxu0 0.0
    %1069 = vmatprep.subr.mxu0 0.0
    %1070 = vmatpush1.msra.mxu0 0.0
    %1071 = vmatprep.subr.mxu0 0.0
    %1072 = vmatpush1.msra.mxu0 0.0
    %1073 = vmatprep.subr.mxu0 0.0
    %1074 = vmatpush1.msra.mxu0 0.0
    %1075 = vmatprep.subr.mxu0 0.0
    %1076 = vmatpush1.msra.mxu0 0.0
    %1077 = vmatprep.subr.mxu0 0.0
    %1078 = vmatpush1.msra.mxu0 0.0
    %1079 = vmatprep.subr.mxu0 0.0
    %1080 = vmatpush1.msra.mxu0 0.0
    %1081 = vmatprep.subr.mxu0 0.0
    %1082 = vmatpush1.msra.mxu0 0.0
    %1083 = vmatprep.mubr.f32.mxu0 0.0
    %1084 = vmatmul.mubr.f32.gmra.mrb[0].mxu0 %v1017
    %v1085 = vpop.f32.mrb[0].mxu0
    %v1086 = vadd.f32 %v403, %v1085
    %v1087 = vpop.f32.mrb[0].mxu0
    %1088 = vdwg.mxu0
    %v1089 = vld [vmem:[#allocation7 + $0x2] sm:$0x1]
    %v1090 = vld [vmem:[#allocation7 + $0x6] sm:$0x1]
    %v1091 = vmul.f32 %v1086, 0.5
    %v1092 = vmul.f32 %v1091, 1.442695
    %v1093 = vpow.pop %v1092
    %v1096 = vrot.slane %v1090, 7
    %v1097 = vsel %vm486, %v1096, %v1089
    %1098 = vrot.lane.b32.xlu0 %v1097, 16
    %v1099 = vpop.permute.xlu0 %1098
    %v1101 = vmul.f32 %v1093, %v1099
    %1103 = vrot.lane.b32.xlu0 %v1101, 112
    %v1104 = vpop.permute.xlu0 %1103
    %v1106 = vadd.f32 %v1086, %v1104
    %v1107 = vmul.f32 %v1106, %v1106
    %1109 = vrot.lane.b32.xlu0 %v1086, 112
    %v1110 = vpop.permute.xlu0 %1109
    %v1112 = vsub.f32 %v1107, %v1110
    %v1113 = vmul.f32 %v1089, %v1089
    %v1114 = vmul.f32 %v1090, %v1090
    %v1117 = vrot.slane %v1114, 7
    %v1118 = vsel %vm486, %v1117, %v1113
    %v1120 = vsub.f32 %v1112, %v1118
    %v1121 = vmul.f32 %v1120, 0.5
    %v1122 = vsel %vm512, %v1121, 0.0
    %1123 = vadd.xlane.f32.xlu0 %v1122
    %v1124 = vpop.xlane.xlu0 %1123
    %v1125 = vld [vmem:[#allocation19 + $0x2] sm:$0x1]
    %v1126 = vlaneseq
    %v1127 = vshrl.u32 %v1126, 7
    %v1128 = vsub.s32 0, %v1127
    %v1129 = vrot.slane %v1125, %v1128
    %v1131 = vsel %vm521, %v1106, 0
    %1133 = vmatprep.subr.mxu0 0.0
    %1134 = vmatpush1.msra.mxu0 %v384
    %1135 = vmatprep.subr.mxu0 0.0
    %1136 = vmatpush1.msra.mxu0 %v385
    %1137 = vmatprep.subr.mxu0 0.0
    %1138 = vmatpush1.msra.mxu0 0.0
    %1139 = vmatprep.subr.mxu0 0.0
    %1140 = vmatpush1.msra.mxu0 0.0
    %1141 = vmatprep.subr.mxu0 0.0
    %1142 = vmatpush1.msra.mxu0 0.0
    %1143 = vmatprep.subr.mxu0 0.0
    %1144 = vmatpush1.msra.mxu0 0.0
    %1145 = vmatprep.subr.mxu0 0.0
    %1146 = vmatpush1.msra.mxu0 0.0
    %1147 = vmatprep.subr.mxu0 0.0
    %1148 = vmatpush1.msra.mxu0 0.0
    %1149 = vmatprep.subr.mxu0 0.0
    %1150 = vmatpush1.msra.mxu0 0.0
    %1151 = vmatprep.subr.mxu0 0.0
    %1152 = vmatpush1.msra.mxu0 0.0
    %1153 = vmatprep.subr.mxu0 0.0
    %1154 = vmatpush1.msra.mxu0 0.0
    %1155 = vmatprep.subr.mxu0 0.0
    %1156 = vmatpush1.msra.mxu0 0.0
    %1157 = vmatprep.subr.mxu0 0.0
    %1158 = vmatpush1.msra.mxu0 0.0
    %1159 = vmatprep.subr.mxu0 0.0
    %1160 = vmatpush1.msra.mxu0 0.0
    %1161 = vmatprep.subr.mxu0 0.0
    %1162 = vmatpush1.msra.mxu0 0.0
    %1163 = vmatprep.subr.mxu0 0.0
    %1164 = vmatpush1.msra.mxu0 0.0
    %1165 = vmatprep.subr.mxu0 0.0
    %1166 = vmatpush1.msra.mxu0 0.0
    %1167 = vmatprep.subr.mxu0 0.0
    %1168 = vmatpush1.msra.mxu0 0.0
    %1169 = vmatprep.subr.mxu0 0.0
    %1170 = vmatpush1.msra.mxu0 0.0
    %1171 = vmatprep.subr.mxu0 0.0
    %1172 = vmatpush1.msra.mxu0 0.0
    %1173 = vmatprep.subr.mxu0 0.0
    %1174 = vmatpush1.msra.mxu0 0.0
    %1175 = vmatprep.subr.mxu0 0.0
    %1176 = vmatpush1.msra.mxu0 0.0
    %1177 = vmatprep.subr.mxu0 0.0
    %1178 = vmatpush1.msra.mxu0 0.0
    %1179 = vmatprep.subr.mxu0 0.0
    %1180 = vmatpush1.msra.mxu0 0.0
    %1181 = vmatprep.subr.mxu0 0.0
    %1182 = vmatpush1.msra.mxu0 0.0
    %1183 = vmatprep.subr.mxu0 0.0
    %1184 = vmatpush1.msra.mxu0 0.0
    %1185 = vmatprep.subr.mxu0 0.0
    %1186 = vmatpush1.msra.mxu0 0.0
    %1187 = vmatprep.subr.mxu0 0.0
    %1188 = vmatpush1.msra.mxu0 0.0
    %1189 = vmatprep.subr.mxu0 0.0
    %1190 = vmatpush1.msra.mxu0 0.0
    %1191 = vmatprep.subr.mxu0 0.0
    %1192 = vmatpush1.msra.mxu0 0.0
    %1193 = vmatprep.subr.mxu0 0.0
    %1194 = vmatpush1.msra.mxu0 0.0
    %1195 = vmatprep.subr.mxu0 0.0
    %1196 = vmatpush1.msra.mxu0 0.0
    %1197 = vmatprep.mubr.f32.mxu0 0.0
    %1198 = vmatmul.mubr.f32.gmra.mrb[0].mxu0 %v1131
    %v1199 = vpop.f32.mrb[0].mxu0
    %v1200 = vadd.f32 %v1129, %v1199
    %v1201 = vpop.f32.mrb[0].mxu0
    %1202 = vdwg.mxu0
    %v1203 = vmax.f32 %v1200, 0.0
    %v1205 = vsel %vm205, %v1203, 0
    %1207 = vmatprep.subr.mxu0 0.0
    %1208 = vmatpush1.msra.mxu0 %v386
    %1209 = vmatprep.subr.mxu0 0.0
    %1210 = vmatpush1.msra.mxu0 %v387
    %1211 = vmatprep.subr.mxu0 0.0
    %1212 = vmatpush1.msra.mxu0 %v388
    %1213 = vmatprep.subr.mxu0 0.0
    %1214 = vmatpush1.msra.mxu0 %v389
    %1215 = vmatprep.subr.mxu0 0.0
    %1216 = vmatpush1.msra.mxu0 0.0
    %1217 = vmatprep.subr.mxu0 0.0
    %1218 = vmatpush1.msra.mxu0 0.0
    %1219 = vmatprep.subr.mxu0 0.0
    %1220 = vmatpush1.msra.mxu0 0.0
    %1221 = vmatprep.subr.mxu0 0.0
    %1222 = vmatpush1.msra.mxu0 0.0
    %1223 = vmatprep.subr.mxu0 0.0
    %1224 = vmatpush1.msra.mxu0 0.0
    %1225 = vmatprep.subr.mxu0 0.0
    %1226 = vmatpush1.msra.mxu0 0.0
    %1227 = vmatprep.subr.mxu0 0.0
    %1228 = vmatpush1.msra.mxu0 0.0
    %1229 = vmatprep.subr.mxu0 0.0
    %1230 = vmatpush1.msra.mxu0 0.0
    %1231 = vmatprep.subr.mxu0 0.0
    %1232 = vmatpush1.msra.mxu0 0.0
    %1233 = vmatprep.subr.mxu0 0.0
    %1234 = vmatpush1.msra.mxu0 0.0
    %1235 = vmatprep.subr.mxu0 0.0
    %1236 = vmatpush1.msra.mxu0 0.0
    %1237 = vmatprep.subr.mxu0 0.0
    %1238 = vmatpush1.msra.mxu0 0.0
    %1239 = vmatprep.subr.mxu0 0.0
    %1240 = vmatpush1.msra.mxu0 0.0
    %1241 = vmatprep.subr.mxu0 0.0
    %1242 = vmatpush1.msra.mxu0 0.0
    %1243 = vmatprep.subr.mxu0 0.0
    %1244 = vmatpush1.msra.mxu0 0.0
    %1245 = vmatprep.subr.mxu0 0.0
    %1246 = vmatpush1.msra.mxu0 0.0
    %1247 = vmatprep.subr.mxu0 0.0
    %1248 = vmatpush1.msra.mxu0 0.0
    %1249 = vmatprep.subr.mxu0 0.0
    %1250 = vmatpush1.msra.mxu0 0.0
    %1251 = vmatprep.subr.mxu0 0.0
    %1252 = vmatpush1.msra.mxu0 0.0
    %1253 = vmatprep.subr.mxu0 0.0
    %1254 = vmatpush1.msra.mxu0 0.0
    %1255 = vmatprep.subr.mxu0 0.0
    %1256 = vmatpush1.msra.mxu0 0.0
    %1257 = vmatprep.subr.mxu0 0.0
    %1258 = vmatpush1.msra.mxu0 0.0
    %1259 = vmatprep.subr.mxu0 0.0
    %1260 = vmatpush1.msra.mxu0 0.0
    %1261 = vmatprep.subr.mxu0 0.0
    %1262 = vmatpush1.msra.mxu0 0.0
    %1263 = vmatprep.subr.mxu0 0.0
    %1264 = vmatpush1.msra.mxu0 0.0
    %1265 = vmatprep.subr.mxu0 0.0
    %1266 = vmatpush1.msra.mxu0 0.0
    %1267 = vmatprep.subr.mxu0 0.0
    %1268 = vmatpush1.msra.mxu0 0.0
    %1269 = vmatprep.subr.mxu0 0.0
    %1270 = vmatpush1.msra.mxu0 0.0
    %1271 = vmatprep.mubr.f32.mxu0 0.0
    %1272 = vmatmul.mubr.f32.gmra.mrb[0].mxu0 %v1205
    %v1273 = vpop.f32.mrb[0].mxu0
    %v1274 = vadd.f32 %v600, %v1273
    %v1275 = vpop.f32.mrb[0].mxu0
    %1276 = vdwg.mxu0
    %v1277 = vmax.f32 %v1274, 0.0
    %v1278 = vmul.f32 %v200, %v1274
    %v1279 = vsub.f32 %v1277, %v1278
    %v1280 = vand.u32 2147483647, %v1274
    %v1281 = vsub.f32 0.0, %v1280
    %v1282 = vmul.f32 %v1281, 1.442695
    %v1283 = vpow.pop %v1282
    %v1284 = vadd.f32 %v1283, 1.0
    %v1285 = vlog2.pop %v1284
    %v1286 = vmul.f32 %v1285, 0.6931472
    %v1287 = vmul.f32 -0.5, %v1283
    %v1288 = vadd.f32 %v1287, 1.0
    %v1289 = vmul.f32 %v1288, %v1283
    %v1290 = vand.u32 2147483647, %v1283
    %vm1291 = vcmp.lt.f32.partialorder %v1290, 0.0004427343
    %v1292 = vsel %vm1291, %v1289, %v1286
    %v1293 = vadd.f32 %v1279, %v1292
    %v1294 = vsel %vm692, %v1293, 0.0
    %1295 = vadd.xlane.f32.xlu0 %v1294
    %v1296 = vpop.xlane.xlu0 %1295
    %v1297 = vsel %vm696, %v1296, 0.0
    %v1298 = vrot.slane %v1297, 4
    %v1299 = vadd.f32 %v1297, %v1298
    %v1300 = vrot.slane %v1299, 2
    %v1301 = vadd.f32 %v1299, %v1300
    %v1302 = vrot.slane %v1301, 1
    %v1303 = vadd.f32 %v1301, %v1302
    %v1304 = vadd.f32 %v1002, %v1303
    %v1305 = vmul.f32 %v371, %v1124
    %1307 = vrot.lane.b32.xlu0 %v1305, 126
    %v1308 = vpop.permute.xlu0 %1307
    %v1310 = vadd.f32 %v1008, %v1308
    %v1311 = vld [vmem:[#allocation13 + $0x3] sm:$0x1]
    %v1312 = vlaneseq
    %v1313 = vshrl.u32 %v1312, 7
    %v1314 = vsub.s32 0, %v1313
    %v1315 = vrot.slane %v1311, %v1314
    %v1316 = vadd.f32 %v276, %v1315
    %v1317 = vmax.f32 %v1316, 0.0
    %v1319 = vsel %vm205, %v1317, 0
    %1321 = vmatprep.subr.mxu0 0.0
    %1322 = vmatpush1.msra.mxu0 %v380
    %1323 = vmatprep.subr.mxu0 0.0
    %1324 = vmatpush1.msra.mxu0 %v381
    %1325 = vmatprep.subr.mxu0 0.0
    %1326 = vmatpush1.msra.mxu0 %v382
    %1327 = vmatprep.subr.mxu0 0.0
    %1328 = vmatpush1.msra.mxu0 %v383
    %1329 = vmatprep.subr.mxu0 0.0
    %1330 = vmatpush1.msra.mxu0 0.0
    %1331 = vmatprep.subr.mxu0 0.0
    %1332 = vmatpush1.msra.mxu0 0.0
    %1333 = vmatprep.subr.mxu0 0.0
    %1334 = vmatpush1.msra.mxu0 0.0
    %1335 = vmatprep.subr.mxu0 0.0
    %1336 = vmatpush1.msra.mxu0 0.0
    %1337 = vmatprep.subr.mxu0 0.0
    %1338 = vmatpush1.msra.mxu0 0.0
    %1339 = vmatprep.subr.mxu0 0.0
    %1340 = vmatpush1.msra.mxu0 0.0
    %1341 = vmatprep.subr.mxu0 0.0
    %1342 = vmatpush1.msra.mxu0 0.0
    %1343 = vmatprep.subr.mxu0 0.0
    %1344 = vmatpush1.msra.mxu0 0.0
    %1345 = vmatprep.subr.mxu0 0.0
    %1346 = vmatpush1.msra.mxu0 0.0
    %1347 = vmatprep.subr.mxu0 0.0
    %1348 = vmatpush1.msra.mxu0 0.0
    %1349 = vmatprep.subr.mxu0 0.0
    %1350 = vmatpush1.msra.mxu0 0.0
    %1351 = vmatprep.subr.mxu0 0.0
    %1352 = vmatpush1.msra.mxu0 0.0
    %1353 = vmatprep.subr.mxu0 0.0
    %1354 = vmatpush1.msra.mxu0 0.0
    %1355 = vmatprep.subr.mxu0 0.0
    %1356 = vmatpush1.msra.mxu0 0.0
    %1357 = vmatprep.subr.mxu0 0.0
    %1358 = vmatpush1.msra.mxu0 0.0
    %1359 = vmatprep.subr.mxu0 0.0
    %1360 = vmatpush1.msra.mxu0 0.0
    %1361 = vmatprep.subr.mxu0 0.0
    %1362 = vmatpush1.msra.mxu0 0.0
    %1363 = vmatprep.subr.mxu0 0.0
    %1364 = vmatpush1.msra.mxu0 0.0
    %1365 = vmatprep.subr.mxu0 0.0
    %1366 = vmatpush1.msra.mxu0 0.0
    %1367 = vmatprep.subr.mxu0 0.0
    %1368 = vmatpush1.msra.mxu0 0.0
    %1369 = vmatprep.subr.mxu0 0.0
    %1370 = vmatpush1.msra.mxu0 0.0
    %1371 = vmatprep.subr.mxu0 0.0
    %1372 = vmatpush1.msra.mxu0 0.0
    %1373 = vmatprep.subr.mxu0 0.0
    %1374 = vmatpush1.msra.mxu0 0.0
    %1375 = vmatprep.subr.mxu0 0.0
    %1376 = vmatpush1.msra.mxu0 0.0
    %1377 = vmatprep.subr.mxu0 0.0
    %1378 = vmatpush1.msra.mxu0 0.0
    %1379 = vmatprep.subr.mxu0 0.0
    %1380 = vmatpush1.msra.mxu0 0.0
    %1381 = vmatprep.subr.mxu0 0.0
    %1382 = vmatpush1.msra.mxu0 0.0
    %1383 = vmatprep.subr.mxu0 0.0
    %1384 = vmatpush1.msra.mxu0 0.0
    %1385 = vmatprep.mubr.f32.mxu0 0.0
    %1386 = vmatmul.mubr.f32.gmra.mrb[0].mxu0 %v1319
    %v1387 = vpop.f32.mrb[0].mxu0
    %v1388 = vadd.f32 %v403, %v1387
    %v1389 = vpop.f32.mrb[0].mxu0
    %1390 = vdwg.mxu0
    %v1391 = vld [vmem:[#allocation7 + $0x3] sm:$0x1]
    %v1392 = vld [vmem:[#allocation7 + $0x7] sm:$0x1]
    %v1393 = vmul.f32 %v1388, 0.5
    %v1394 = vmul.f32 %v1393, 1.442695
    %v1395 = vpow.pop %v1394
    %v1398 = vrot.slane %v1392, 7
    %v1399 = vsel %vm486, %v1398, %v1391
    %1400 = vrot.lane.b32.xlu0 %v1399, 16
    %v1401 = vpop.permute.xlu0 %1400
    %v1403 = vmul.f32 %v1395, %v1401
    %1405 = vrot.lane.b32.xlu0 %v1403, 112
    %v1406 = vpop.permute.xlu0 %1405
    %v1408 = vadd.f32 %v1388, %v1406
    %v1409 = vmul.f32 %v1408, %v1408
    %1411 = vrot.lane.b32.xlu0 %v1388, 112
    %v1412 = vpop.permute.xlu0 %1411
    %v1414 = vsub.f32 %v1409, %v1412
    %v1415 = vmul.f32 %v1391, %v1391
    %v1416 = vmul.f32 %v1392, %v1392
    %v1419 = vrot.slane %v1416, 7
    %v1420 = vsel %vm486, %v1419, %v1415
    %v1422 = vsub.f32 %v1414, %v1420
    %v1423 = vmul.f32 %v1422, 0.5
    %v1424 = vsel %vm512, %v1423, 0.0
    %1425 = vadd.xlane.f32.xlu0 %v1424
    %v1426 = vpop.xlane.xlu0 %1425
    %v1427 = vld [vmem:[#allocation19 + $0x3] sm:$0x1]
    %v1428 = vlaneseq
    %v1429 = vshrl.u32 %v1428, 7
    %v1430 = vsub.s32 0, %v1429
    %v1431 = vrot.slane %v1427, %v1430
    %v1433 = vsel %vm521, %v1408, 0
    %1435 = vmatprep.subr.mxu0 0.0
    %1436 = vmatpush1.msra.mxu0 %v384
    %1437 = vmatprep.subr.mxu0 0.0
    %1438 = vmatpush1.msra.mxu0 %v385
    %1439 = vmatprep.subr.mxu0 0.0
    %1440 = vmatpush1.msra.mxu0 0.0
    %1441 = vmatprep.subr.mxu0 0.0
    %1442 = vmatpush1.msra.mxu0 0.0
    %1443 = vmatprep.subr.mxu0 0.0
    %1444 = vmatpush1.msra.mxu0 0.0
    %1445 = vmatprep.subr.mxu0 0.0
    %1446 = vmatpush1.msra.mxu0 0.0
    %1447 = vmatprep.subr.mxu0 0.0
    %1448 = vmatpush1.msra.mxu0 0.0
    %1449 = vmatprep.subr.mxu0 0.0
    %1450 = vmatpush1.msra.mxu0 0.0
    %1451 = vmatprep.subr.mxu0 0.0
    %1452 = vmatpush1.msra.mxu0 0.0
    %1453 = vmatprep.subr.mxu0 0.0
    %1454 = vmatpush1.msra.mxu0 0.0
    %1455 = vmatprep.subr.mxu0 0.0
    %1456 = vmatpush1.msra.mxu0 0.0
    %1457 = vmatprep.subr.mxu0 0.0
    %1458 = vmatpush1.msra.mxu0 0.0
    %1459 = vmatprep.subr.mxu0 0.0
    %1460 = vmatpush1.msra.mxu0 0.0
    %1461 = vmatprep.subr.mxu0 0.0
    %1462 = vmatpush1.msra.mxu0 0.0
    %1463 = vmatprep.subr.mxu0 0.0
    %1464 = vmatpush1.msra.mxu0 0.0
    %1465 = vmatprep.subr.mxu0 0.0
    %1466 = vmatpush1.msra.mxu0 0.0
    %1467 = vmatprep.subr.mxu0 0.0
    %1468 = vmatpush1.msra.mxu0 0.0
    %1469 = vmatprep.subr.mxu0 0.0
    %1470 = vmatpush1.msra.mxu0 0.0
    %1471 = vmatprep.subr.mxu0 0.0
    %1472 = vmatpush1.msra.mxu0 0.0
    %1473 = vmatprep.subr.mxu0 0.0
    %1474 = vmatpush1.msra.mxu0 0.0
    %1475 = vmatprep.subr.mxu0 0.0
    %1476 = vmatpush1.msra.mxu0 0.0
    %1477 = vmatprep.subr.mxu0 0.0
    %1478 = vmatpush1.msra.mxu0 0.0
    %1479 = vmatprep.subr.mxu0 0.0
    %1480 = vmatpush1.msra.mxu0 0.0
    %1481 = vmatprep.subr.mxu0 0.0
    %1482 = vmatpush1.msra.mxu0 0.0
    %1483 = vmatprep.subr.mxu0 0.0
    %1484 = vmatpush1.msra.mxu0 0.0
    %1485 = vmatprep.subr.mxu0 0.0
    %1486 = vmatpush1.msra.mxu0 0.0
    %1487 = vmatprep.subr.mxu0 0.0
    %1488 = vmatpush1.msra.mxu0 0.0
    %1489 = vmatprep.subr.mxu0 0.0
    %1490 = vmatpush1.msra.mxu0 0.0
    %1491 = vmatprep.subr.mxu0 0.0
    %1492 = vmatpush1.msra.mxu0 0.0
    %1493 = vmatprep.subr.mxu0 0.0
    %1494 = vmatpush1.msra.mxu0 0.0
    %1495 = vmatprep.subr.mxu0 0.0
    %1496 = vmatpush1.msra.mxu0 0.0
    %1497 = vmatprep.subr.mxu0 0.0
    %1498 = vmatpush1.msra.mxu0 0.0
    %1499 = vmatprep.mubr.f32.mxu0 0.0
    %1500 = vmatmul.mubr.f32.gmra.mrb[0].mxu0 %v1433
    %v1501 = vpop.f32.mrb[0].mxu0
    %v1502 = vadd.f32 %v1431, %v1501
    %v1503 = vpop.f32.mrb[0].mxu0
    %1504 = vdwg.mxu0
    %v1505 = vmax.f32 %v1502, 0.0
    %v1507 = vsel %vm205, %v1505, 0
    %1509 = vmatprep.subr.mxu0 0.0
    %1510 = vmatpush1.msra.mxu0 %v386
    %1511 = vmatprep.subr.mxu0 0.0
    %1512 = vmatpush1.msra.mxu0 %v387
    %1513 = vmatprep.subr.mxu0 0.0
    %1514 = vmatpush1.msra.mxu0 %v388
    %1515 = vmatprep.subr.mxu0 0.0
    %1516 = vmatpush1.msra.mxu0 %v389
    %1517 = vmatprep.subr.mxu0 0.0
    %1518 = vmatpush1.msra.mxu0 0.0
    %1519 = vmatprep.subr.mxu0 0.0
    %1520 = vmatpush1.msra.mxu0 0.0
    %1521 = vmatprep.subr.mxu0 0.0
    %1522 = vmatpush1.msra.mxu0 0.0
    %1523 = vmatprep.subr.mxu0 0.0
    %1524 = vmatpush1.msra.mxu0 0.0
    %1525 = vmatprep.subr.mxu0 0.0
    %1526 = vmatpush1.msra.mxu0 0.0
    %1527 = vmatprep.subr.mxu0 0.0
    %1528 = vmatpush1.msra.mxu0 0.0
    %1529 = vmatprep.subr.mxu0 0.0
    %1530 = vmatpush1.msra.mxu0 0.0
    %1531 = vmatprep.subr.mxu0 0.0
    %1532 = vmatpush1.msra.mxu0 0.0
    %1533 = vmatprep.subr.mxu0 0.0
    %1534 = vmatpush1.msra.mxu0 0.0
    %1535 = vmatprep.subr.mxu0 0.0
    %1536 = vmatpush1.msra.mxu0 0.0
    %1537 = vmatprep.subr.mxu0 0.0
    %1538 = vmatpush1.msra.mxu0 0.0
    %1539 = vmatprep.subr.mxu0 0.0
    %1540 = vmatpush1.msra.mxu0 0.0
    %1541 = vmatprep.subr.mxu0 0.0
    %1542 = vmatpush1.msra.mxu0 0.0
    %1543 = vmatprep.subr.mxu0 0.0
    %1544 = vmatpush1.msra.mxu0 0.0
    %1545 = vmatprep.subr.mxu0 0.0
    %1546 = vmatpush1.msra.mxu0 0.0
    %1547 = vmatprep.subr.mxu0 0.0
    %1548 = vmatpush1.msra.mxu0 0.0
    %1549 = vmatprep.subr.mxu0 0.0
    %1550 = vmatpush1.msra.mxu0 0.0
    %1551 = vmatprep.subr.mxu0 0.0
    %1552 = vmatpush1.msra.mxu0 0.0
    %1553 = vmatprep.subr.mxu0 0.0
    %1554 = vmatpush1.msra.mxu0 0.0
    %1555 = vmatprep.subr.mxu0 0.0
    %1556 = vmatpush1.msra.mxu0 0.0
    %1557 = vmatprep.subr.mxu0 0.0
    %1558 = vmatpush1.msra.mxu0 0.0
    %1559 = vmatprep.subr.mxu0 0.0
    %1560 = vmatpush1.msra.mxu0 0.0
    %1561 = vmatprep.subr.mxu0 0.0
    %1562 = vmatpush1.msra.mxu0 0.0
    %1563 = vmatprep.subr.mxu0 0.0
    %1564 = vmatpush1.msra.mxu0 0.0
    %1565 = vmatprep.subr.mxu0 0.0
    %1566 = vmatpush1.msra.mxu0 0.0
    %1567 = vmatprep.subr.mxu0 0.0
    %1568 = vmatpush1.msra.mxu0 0.0
    %1569 = vmatprep.subr.mxu0 0.0
    %1570 = vmatpush1.msra.mxu0 0.0
    %1571 = vmatprep.subr.mxu0 0.0
    %1572 = vmatpush1.msra.mxu0 0.0
    %1573 = vmatprep.mubr.f32.mxu0 0.0
    %1574 = vmatmul.mubr.f32.gmra.mrb[0].mxu0 %v1507
    %v1575 = vpop.f32.mrb[0].mxu0
    %v1576 = vadd.f32 %v600, %v1575
    %v1577 = vpop.f32.mrb[0].mxu0
    %1578 = vdwg.mxu0
    %v1579 = vmax.f32 %v1576, 0.0
    %v1580 = vmul.f32 %v200, %v1576
    %v1581 = vsub.f32 %v1579, %v1580
    %v1582 = vand.u32 2147483647, %v1576
    %v1583 = vsub.f32 0.0, %v1582
    %v1584 = vmul.f32 %v1583, 1.442695
    %v1585 = vpow.pop %v1584
    %v1586 = vadd.f32 %v1585, 1.0
    %v1587 = vlog2.pop %v1586
    %v1588 = vmul.f32 %v1587, 0.6931472
    %v1589 = vmul.f32 -0.5, %v1585
    %v1590 = vadd.f32 %v1589, 1.0
    %v1591 = vmul.f32 %v1590, %v1585
    %v1592 = vand.u32 2147483647, %v1585
    %vm1593 = vcmp.lt.f32.partialorder %v1592, 0.0004427343
    %v1594 = vsel %vm1593, %v1591, %v1588
    %v1595 = vadd.f32 %v1581, %v1594
    %v1596 = vsel %vm692, %v1595, 0.0
    %1597 = vadd.xlane.f32.xlu0 %v1596
    %v1598 = vpop.xlane.xlu0 %1597
    %v1599 = vsel %vm696, %v1598, 0.0
    %v1600 = vrot.slane %v1599, 4
    %v1601 = vadd.f32 %v1599, %v1600
    %v1602 = vrot.slane %v1601, 2
    %v1603 = vadd.f32 %v1601, %v1602
    %v1604 = vrot.slane %v1603, 1
    %v1605 = vadd.f32 %v1603, %v1604
    %v1606 = vadd.f32 %v1304, %v1605
    %v1607 = vmul.f32 %v371, %v1426
    %1609 = vrot.lane.b32.xlu0 %v1607, 125
    %v1610 = vpop.permute.xlu0 %1609
    %v1612 = vadd.f32 %v1310, %v1610
    %v1613 = vld [vmem:[#allocation2] sm:$0x1]
    %v1614 = vadd.f32 %v1613, %v1606
    %vm1615 = vcmask 0
    %1616 = vst.msk [vmem:[#allocation2] sm:$0x1] %vm1615, %v1614
    %v1617 = vld [vmem:[#allocation3] sm:$0x1]
    %v1618 = vsub.f32 %v379, %v1612
    %vm1619 = vcmask 1024
    %v1620 = vsel %vm1619, %v1618, 0.0
    %v1621 = vrot.slane %v1620, 4
    %v1622 = vadd.f32 %v1620, %v1621
    %v1623 = vrot.slane %v1622, 2
    %v1624 = vadd.f32 %v1622, %v1623
    %v1625 = vrot.slane %v1624, 1
    %v1626 = vadd.f32 %v1624, %v1625
    %v1627 = vadd.f32 %v1617, %v1626
    %1628 = vst.msk [vmem:[#allocation3] sm:$0x1] %vm1615, %v1627
    // Predicated region
    $region102: #{tpu_custom_call.1} parent=1 // pred_check
      %p1629 = pneg %p193
    $region103: #{tpu_custom_call.1} parent=1 // pred_check_branch
      %1631 = sbr.rel (%p1629) target = $region105
    $region104: #{tpu_custom_call.1} parent=1 // pred_region
      %v1632 = vld [vmem:[#allocation2] sm:$0x1]
      %v1633 = vsub.f32 0.0, %v1632
      %v1634 = vmul.f32 %v1633, 0.00390625
      %v1635 = vadd.f32 %v1634, -1.3862944
      %v1636 = vld [vmem:[#allocation3] sm:$0x1]
      %v1637 = vmul.f32 %v1636, 0.5
      %v1638 = vadd.f32 %v1635, %v1637
      %1639 = vst.msk [vmem:[#allocation24] sm:$0x1] %vm1615, %v1638
    $region105: #{tpu_custom_call.1} parent=1 // pred_fallthru
      _
    // Predicated region
    $region106: #{tpu_custom_call.1} parent=1 // pred_check
      _
    $region107: #{tpu_custom_call.1} parent=1 // pred_check_branch
      %1641 = sbr.rel (0) target = $region109
    $region108: #{tpu_custom_call.1} parent=1 // pred_region
      %s1643 = ssub.s32 16, 16
      %1644 = vsyncadd [#allocation6], %s1643
      %s1646 = sshll.u32 [#allocation24], 4
      %s1647 = int_to_ptr.vmem [resolvable:$true] %s1646
      %1649 = dma.vmem_to_hbm [thread:$0]  %s1647, 16, %s12, [#allocation6]
    $region109: #{tpu_custom_call.1} parent=1 // pred_fallthru
      _
    // Predicated region
    $region110: #{tpu_custom_call.1} parent=1 // pred_check
      _
    $region111: #{tpu_custom_call.1} parent=1 // pred_check_branch
      %1651 = sbr.rel (0) target = $region113
    $region112: #{tpu_custom_call.1} parent=1 // pred_region
      %1652 = dma.done [#allocation6], 16
    $region113: #{tpu_custom_call.1} parent=1 // pred_fallthru
      _
    %1653 = vsyncpa [#allocation5], 1
    %1654 = vsyncpa [#allocation8], 1
    %1655 = vsyncpa [#allocation11], 1
    %1656 = vsyncpa [#allocation14], 1
    %1657 = vsyncpa [#allocation17], 1
    %1658 = vsyncpa [#allocation20], 1
    %1659 = vsyncpa [#allocation23], 1
    %1660 = vsyncpa [#allocation6], 1

</llo_original>
